<compile_context>
chip_gen: v5e
topology: v5e:2x2
jax: 0.10.0
libtpu: 0.0.40
codegen_flags: <defaults>
</compile_context>

<pallas_src>
import functools

import jax
import jax.numpy as jnp
from jax.experimental import pallas as pl
from jax.experimental.pallas import tpu as pltpu

_EPS = 1e-5


# ---------------------------------------------------------------------------
# Fused Pallas kernel (B images per grid step)
# ---------------------------------------------------------------------------
def _fused_block_kernel(x_ref, w1_ref, b1_ref, w2_ref, b2_ref, o_ref, im_ref, *, B, H):
    """conv3x3+BN1+ReLU -> conv3x3+BN2 -> +residual -> ReLU, all in VMEM.

    x_ref  : (B*H, W*C)      f32           lane-dense input rows (also the residual)
    w1_ref : (3*W*C, W*C)    compute_dtype banded conv1 weights, bands stacked along K
                                            (BN1 scale folded in)
    b1_ref : (1, W*C)        f32           BN1 bias, tiled over W
    w2_ref : (3*W*C, W*C)    compute_dtype banded conv2 weights (BN2 scale folded)
    b2_ref : (1, W*C)        f32           BN2 bias, tiled over W
    o_ref  : (B*H, W*C)      f32
    im_ref : VMEM (B*H, 3*W*C) compute_dtype  im2row scratch, reused for both stages.
             Lane blocks: [row above | row | row below] for each output row.
    """
    cdt = im_ref.dtype
    WC = x_ref.shape[1]

    # Zero the per-image halo rows of the im2row buffer.  Done every grid step (see
    # header): these rows are never written with data below, so they stay zero for
    # stage 2 as well.  Cost: 2*B single-row stores per step.
    zrow = jnp.zeros((1, WC), cdt)
    for b in range(B):
        im_ref[b * H : b * H + 1, 0:WC] = zrow                        # "row above" of row 0
        im_ref[(b + 1) * H - 1 : (b + 1) * H, 2 * WC : 3 * WC] = zrow  # "row below" of row H-1

    # --- stage 1: im2row(x) -> one (M, 3*WC)x(3*WC, WC) MXU dot -> BN1 bias + ReLU ---
    for b in range(B):
        xb = x_ref[b * H : (b + 1) * H, :].astype(cdt)                # (H, WC)
        im_ref[b * H + 1 : (b + 1) * H, 0:WC] = xb[0 : H - 1, :]      # row above
        im_ref[b * H : (b + 1) * H, WC : 2 * WC] = xb                 # same row
        im_ref[b * H : (b + 1) * H - 1, 2 * WC : 3 * WC] = xb[1:H, :]  # row below

    acc = jnp.dot(im_ref[...], w1_ref[...], preferred_element_type=jnp.float32)  # (M, WC) f32
    h = jnp.maximum(acc + b1_ref[...], 0.0).astype(cdt)   # BN1 bias + ReLU (Dropout2d p=0.01 = id)

    # --- stage 2: im2row(h) reusing the same scratch -> dot -> BN2 + residual + ReLU ---
    for b in range(B):
        hb = h[b * H : (b + 1) * H, :]
        im_ref[b * H + 1 : (b + 1) * H, 0:WC] = hb[0 : H - 1, :]
        im_ref[b * H : (b + 1) * H, WC : 2 * WC] = hb
        im_ref[b * H : (b + 1) * H - 1, 2 * WC : 3 * WC] = hb[1:H, :]

    acc = jnp.dot(im_ref[...], w2_ref[...], preferred_element_type=jnp.float32)
    # Residual re-read from the resident VMEM input block at the epilogue (not kept
    # live in vregs across both matmuls).
    y = jnp.maximum(acc + b2_ref[...] + x_ref[...], 0.0)  # BN2 bias + residual + ReLU (Dropout p=0.01 = id)
    o_ref[...] = y.astype(o_ref.dtype)


# ---------------------------------------------------------------------------
# Wrapper-side weight preparation (done ONCE at block construction)
# ---------------------------------------------------------------------------
def _fold_bn(gamma, beta, mean, var):
    scale = gamma / jnp.sqrt(var + _EPS)
    return scale, beta - mean * scale


def _banded_conv_weights(w_oihw, scale, W, compute_dtype):
    """PyTorch (C_out, C_in, 3, 3) conv weight + folded BN scale -> (3*W*C_in, W*C_out).

    Band kh, entry [(w_in*C_in + c), (w_out*C_out + f)] = w[kh, kw, c, f] for
    w_in = w_out + kw - 1 (valid positions only), so a lane-dense (M, W*C_in) row slab
    times the stacked matrix performs the 3x3 conv with padding=1 along W (the column
    halo is implicit in the missing band entries; the row halo comes from the im2row
    zero rows).  Bands are stacked along K so lane block kh of the im2row buffer
    multiplies band kh.
    """
    w = jnp.transpose(w_oihw, (2, 3, 1, 0)) * scale[None, None, None, :]   # (3,3,Cin,Cout)
    cin, cout = w.shape[2], w.shape[3]
    bands = []
    for kh in range(3):
        blk = jnp.zeros((W * cin, W * cout), jnp.float32)
        for kw in range(3):
            shift = jnp.eye(W, W, k=1 - kw, dtype=jnp.float32)   # rows: w_in, cols: w_out
            blk = blk + jnp.kron(shift, w[kh, kw])
        bands.append(blk)
    return jnp.stack(bands, axis=0).reshape(3 * W * cin, W * cout).astype(compute_dtype)


def _pick_batch_block(N, H, *, target_m=256, min_grid=2):
    """Largest divisor B of N with B*H <= target_m, preferring >= min_grid grid steps
    (so a 2-TC chip keeps both cores busy)."""
    divisors = [b for b in range(1, N + 1) if N % b == 0]
    fits = [b for b in divisors if b * H <= target_m] or [1]
    multi = [b for b in fits if N // b >= min_grid]
    return max(multi) if multi else max(fits)


# ---------------------------------------------------------------------------
# BasicBlock builder (inference mode, stride=1, downsample=None)
# ---------------------------------------------------------------------------
def make_basic_block(params, *, H, W, C, compute_dtype=jnp.bfloat16,
                     batch_block=None, lane_dense_io=False):
    """Returns a jitted forward(x).  Weight banding / BN folding happens here, once.

    x: (N, C, H, W) f32 (PyTorch convention), or (N, H, W*C) lane-dense if
    lane_dense_io=True (recommended between stacked blocks — skips the NCHW
    transposes, which are full HBM round trips done outside the kernel).
    """
    assert params["conv1_w"].shape == (C, C, 3, 3), "BasicBlock w/o downsample needs C_in == C_out"
    WC = W * C
    assert WC % 128 == 0, "lane-dense layout needs W*C to be a multiple of 128"

    s1, bias1 = _fold_bn(params["bn1_gamma"], params["bn1_beta"],
                         params["bn1_mean"], params["bn1_var"])
    s2, bias2 = _fold_bn(params["bn2_gamma"], params["bn2_beta"],
                         params["bn2_mean"], params["bn2_var"])
    w1 = _banded_conv_weights(params["conv1_w"], s1, W, compute_dtype)   # (3*WC, WC)
    w2 = _banded_conv_weights(params["conv2_w"], s2, W, compute_dtype)
    b1 = jnp.tile(bias1, (W,))[None, :].astype(jnp.float32)              # (1, WC)
    b2 = jnp.tile(bias2, (W,))[None, :].astype(jnp.float32)

    def forward(x):
        N = x.shape[0]
        if lane_dense_io:
            x_dense = x                                                  # (N, H, WC)
        else:
            # NCHW -> NHWC -> lane-dense: layout plumbing outside the kernel.
            x_dense = jnp.transpose(x, (0, 2, 3, 1)).reshape(N, H, WC)

        B = batch_block if batch_block is not None else _pick_batch_block(N, H)
        assert N % B == 0, "batch_block must divide N"
        M = B * H
        assert M % 8 == 0, "B*H must be a multiple of 8 (sublane tiling)"

        x_rows = x_dense.reshape(N * H, WC)   # same HBM layout; free reshape

        kernel = functools.partial(_fused_block_kernel, B=B, H=H)
        out = pl.pallas_call(
            kernel,
            out_shape=jax.ShapeDtypeStruct((N * H, WC), jnp.float32),
            grid_spec=pltpu.PrefetchScalarGridSpec(
                num_scalar_prefetch=0,
                grid=(N // B,),
                in_specs=[
                    pl.BlockSpec((M, WC), lambda n: (n, 0)),
                    pl.BlockSpec((3 * WC, WC), lambda n: (0, 0)),   # grid-invariant weights
                    pl.BlockSpec((1, WC), lambda n: (0, 0)),
                    pl.BlockSpec((3 * WC, WC), lambda n: (0, 0)),
                    pl.BlockSpec((1, WC), lambda n: (0, 0)),
                ],
                out_specs=pl.BlockSpec((M, WC), lambda n: (n, 0)),
                scratch_shapes=[
                    pltpu.VMEM((M, 3 * WC), compute_dtype),   # im2row, reused for both convs
                ],
            ),
            compiler_params=pltpu.CompilerParams(
                dimension_semantics=("parallel",),
                vmem_limit_bytes=32 * 1024 * 1024,
            ),
        )(x_rows, w1, b1, w2, b2)

        out = out.reshape(N, H, W, C)
        if lane_dense_io:
            return out.reshape(N, H, WC)
        return jnp.transpose(out, (0, 3, 1, 2))                          # back to NCHW

    return jax.jit(forward)


# ---------------------------------------------------------------------------
# Pure-JAX reference (for sanity check)
# ---------------------------------------------------------------------------
def _reference(x_nchw, params, *, conv_dtype=None):
    """Eval-mode BasicBlock reference (BN folded into scale/bias — mathematically
    identical to BatchNorm2d in eval).  conv_dtype=jnp.bfloat16 mirrors the kernel's
    mixed-precision MXU operands (f32 accumulation)."""
    def q(t):
        return t if conv_dtype is None else t.astype(conv_dtype).astype(jnp.float32)

    s1, b1 = _fold_bn(params["bn1_gamma"], params["bn1_beta"],
                      params["bn1_mean"], params["bn1_var"])
    s2, b2 = _fold_bn(params["bn2_gamma"], params["bn2_beta"],
                      params["bn2_mean"], params["bn2_var"])
    w1 = jnp.transpose(params["conv1_w"], (2, 3, 1, 0)) * s1[None, None, None, :]
    w2 = jnp.transpose(params["conv2_w"], (2, 3, 1, 0)) * s2[None, None, None, :]

    x = jnp.transpose(x_nchw, (0, 2, 3, 1))   # NHWC
    conv = lambda a, w: jax.lax.conv_general_dilated(
        a, w, (1, 1), ((1, 1), (1, 1)),
        dimension_numbers=("NHWC", "HWIO", "NHWC"),
        preferred_element_type=jnp.float32)

    h = jnp.maximum(conv(q(x), q(w1)) + b1, 0.0)
    y = jnp.maximum(conv(q(h), q(w2)) + b2 + x, 0.0)
    return jnp.transpose(y, (0, 3, 1, 2))


# ---------------------------------------------------------------------------
# Main
# ---------------------------------------------------------------------------
if __name__ == "__main__":
    # W*C = 128 -> one full 128-lane vreg row per image row.
    # N=16 with the auto-picked B=8 gives matmul M = B*H = 128 and grid=(2,)
    # (two steps so a 2-TC chip can shard them).
    N, C, H, W = 16, 8, 16, 16
    key = jax.random.PRNGKey(0)
    k = jax.random.split(key, 9)

    fan_in = C * 3 * 3
    params = {
        "conv1_w": jax.random.normal(k[0], (C, C, 3, 3), jnp.float32) / jnp.sqrt(fan_in),
        "conv2_w": jax.random.normal(k[1], (C, C, 3, 3), jnp.float32) / jnp.sqrt(fan_in),
        "bn1_gamma": 1.0 + 0.1 * jax.random.normal(k[2], (C,), jnp.float32),
        "bn1_beta": 0.05 * jax.random.normal(k[3], (C,), jnp.float32),
        "bn1_mean": 0.1 * jax.random.normal(k[4], (C,), jnp.float32),
        "bn1_var": 1.0 + 0.1 * jnp.abs(jax.random.normal(k[5], (C,), jnp.float32)),
        "bn2_gamma": 1.0 + 0.1 * jax.random.normal(k[6], (C,), jnp.float32),
        "bn2_beta": 0.05 * jax.random.normal(k[7], (C,), jnp.float32),
        "bn2_mean": jnp.zeros((C,), jnp.float32),
        "bn2_var": jnp.ones((C,), jnp.float32),
    }
    x = jax.random.normal(k[8], (N, C, H, W), jnp.float32)

    # Weights are banded / BN-folded ONCE here, not per forward call.
    block_fn = make_basic_block(params, H=H, W=W, C=C)

    out = jax.block_until_ready(block_fn(x))   # bf16 MXU operands, f32 accumulate
    assert out.shape == (N, C, H, W)

    # Tight check against a reference using the same bf16 operand quantization.
    ref_mixed = _reference(x, params, conv_dtype=jnp.bfloat16)
    assert jnp.allclose(out, ref_mixed, rtol=1e-2, atol=1e-2), "mismatch vs precision-matched reference"

    # Loose check against the pure-f32 PyTorch-equivalent math (slack = bf16 operand rounding).
    ref_f32 = _reference(x, params)
    assert jnp.allclose(out, ref_f32, rtol=5e-2, atol=5e-2), "mismatch vs float32 reference"

    print("KERNEL_OK")
</pallas_src>

<mosaic_0001>
module attributes {stable_mosaic.version = 11 : i64} {
  func.func @_fused_block_kernel(%arg0: i32, %arg1: memref<128x128xf32, #tpu.memory_space<vmem>>, %arg2: memref<384x128xbf16, #tpu.memory_space<vmem>>, %arg3: memref<1x128xf32, #tpu.memory_space<vmem>>, %arg4: memref<384x128xbf16, #tpu.memory_space<vmem>>, %arg5: memref<1x128xf32, #tpu.memory_space<vmem>>, %arg6: memref<128x128xf32, #tpu.memory_space<vmem>>, %arg7: memref<128x384xbf16, #tpu.memory_space<vmem>>) attributes {dimension_semantics = [#tpu.dimension_semantics<parallel>], iteration_bounds = array<i64: 2>, scalar_prefetch = 0 : i64, scratch_operands = 1 : i64, tpu.core_type = #tpu.core_type<tc>, window_params = [{transform_indices = @transform_0, window_bounds = array<i64: 128, 128>}, {pipeline_mode = #tpu.pipeline_mode<synchronous>, transform_indices = @transform_1, window_bounds = array<i64: 384, 128>}, {pipeline_mode = #tpu.pipeline_mode<synchronous>, transform_indices = @transform_2, window_bounds = array<i64: 1, 128>}, {pipeline_mode = #tpu.pipeline_mode<synchronous>, transform_indices = @transform_3, window_bounds = array<i64: 384, 128>}, {pipeline_mode = #tpu.pipeline_mode<synchronous>, transform_indices = @transform_4, window_bounds = array<i64: 1, 128>}, {transform_indices = @transform_5, window_bounds = array<i64: 128, 128>}]} {
    %cst = arith.constant 0.000000e+00 : bf16
    %0 = vector.broadcast %cst : bf16 to vector<1x128xbf16>
    %c0 = arith.constant 0 : index
    %c0_0 = arith.constant 0 : index
    %1 = vector.load %arg7[%c0, %c0_0] : memref<128x384xbf16, #tpu.memory_space<vmem>>, vector<1x128xbf16>
    tpu.vector_store %arg7[%c0, %c0_0], %0 {strides = array<i32>} : memref<128x384xbf16, #tpu.memory_space<vmem>>, vector<1x128xbf16>,
    %c15 = arith.constant 15 : index
    %c256 = arith.constant 256 : index
    %2 = vector.load %arg7[%c15, %c256] : memref<128x384xbf16, #tpu.memory_space<vmem>>, vector<1x128xbf16>
    tpu.vector_store %arg7[%c15, %c256], %0 {strides = array<i32>} : memref<128x384xbf16, #tpu.memory_space<vmem>>, vector<1x128xbf16>,
    %c16 = arith.constant 16 : index
    %c0_1 = arith.constant 0 : index
    %3 = vector.load %arg7[%c16, %c0_1] : memref<128x384xbf16, #tpu.memory_space<vmem>>, vector<1x128xbf16>
    tpu.vector_store %arg7[%c16, %c0_1], %0 {strides = array<i32>} : memref<128x384xbf16, #tpu.memory_space<vmem>>, vector<1x128xbf16>,
    %c31 = arith.constant 31 : index
    %c256_2 = arith.constant 256 : index
    %4 = vector.load %arg7[%c31, %c256_2] : memref<128x384xbf16, #tpu.memory_space<vmem>>, vector<1x128xbf16>
    tpu.vector_store %arg7[%c31, %c256_2], %0 {strides = array<i32>} : memref<128x384xbf16, #tpu.memory_space<vmem>>, vector<1x128xbf16>,
    %c32 = arith.constant 32 : index
    %c0_3 = arith.constant 0 : index
    %5 = vector.load %arg7[%c32, %c0_3] : memref<128x384xbf16, #tpu.memory_space<vmem>>, vector<1x128xbf16>
    tpu.vector_store %arg7[%c32, %c0_3], %0 {strides = array<i32>} : memref<128x384xbf16, #tpu.memory_space<vmem>>, vector<1x128xbf16>,
    %c47 = arith.constant 47 : index
    %c256_4 = arith.constant 256 : index
    %6 = vector.load %arg7[%c47, %c256_4] : memref<128x384xbf16, #tpu.memory_space<vmem>>, vector<1x128xbf16>
    tpu.vector_store %arg7[%c47, %c256_4], %0 {strides = array<i32>} : memref<128x384xbf16, #tpu.memory_space<vmem>>, vector<1x128xbf16>,
    %c48 = arith.constant 48 : index
    %c0_5 = arith.constant 0 : index
    %7 = vector.load %arg7[%c48, %c0_5] : memref<128x384xbf16, #tpu.memory_space<vmem>>, vector<1x128xbf16>
    tpu.vector_store %arg7[%c48, %c0_5], %0 {strides = array<i32>} : memref<128x384xbf16, #tpu.memory_space<vmem>>, vector<1x128xbf16>,
    %c63 = arith.constant 63 : index
    %c256_6 = arith.constant 256 : index
    %8 = vector.load %arg7[%c63, %c256_6] : memref<128x384xbf16, #tpu.memory_space<vmem>>, vector<1x128xbf16>
    tpu.vector_store %arg7[%c63, %c256_6], %0 {strides = array<i32>} : memref<128x384xbf16, #tpu.memory_space<vmem>>, vector<1x128xbf16>,
    %c64 = arith.constant 64 : index
    %c0_7 = arith.constant 0 : index
    %9 = vector.load %arg7[%c64, %c0_7] : memref<128x384xbf16, #tpu.memory_space<vmem>>, vector<1x128xbf16>
    tpu.vector_store %arg7[%c64, %c0_7], %0 {strides = array<i32>} : memref<128x384xbf16, #tpu.memory_space<vmem>>, vector<1x128xbf16>,
    %c79 = arith.constant 79 : index
    %c256_8 = arith.constant 256 : index
    %10 = vector.load %arg7[%c79, %c256_8] : memref<128x384xbf16, #tpu.memory_space<vmem>>, vector<1x128xbf16>
    tpu.vector_store %arg7[%c79, %c256_8], %0 {strides = array<i32>} : memref<128x384xbf16, #tpu.memory_space<vmem>>, vector<1x128xbf16>,
    %c80 = arith.constant 80 : index
    %c0_9 = arith.constant 0 : index
    %11 = vector.load %arg7[%c80, %c0_9] : memref<128x384xbf16, #tpu.memory_space<vmem>>, vector<1x128xbf16>
    tpu.vector_store %arg7[%c80, %c0_9], %0 {strides = array<i32>} : memref<128x384xbf16, #tpu.memory_space<vmem>>, vector<1x128xbf16>,
    %c95 = arith.constant 95 : index
    %c256_10 = arith.constant 256 : index
    %12 = vector.load %arg7[%c95, %c256_10] : memref<128x384xbf16, #tpu.memory_space<vmem>>, vector<1x128xbf16>
    tpu.vector_store %arg7[%c95, %c256_10], %0 {strides = array<i32>} : memref<128x384xbf16, #tpu.memory_space<vmem>>, vector<1x128xbf16>,
    %c96 = arith.constant 96 : index
    %c0_11 = arith.constant 0 : index
    %13 = vector.load %arg7[%c96, %c0_11] : memref<128x384xbf16, #tpu.memory_space<vmem>>, vector<1x128xbf16>
    tpu.vector_store %arg7[%c96, %c0_11], %0 {strides = array<i32>} : memref<128x384xbf16, #tpu.memory_space<vmem>>, vector<1x128xbf16>,
    %c111 = arith.constant 111 : index
    %c256_12 = arith.constant 256 : index
    %14 = vector.load %arg7[%c111, %c256_12] : memref<128x384xbf16, #tpu.memory_space<vmem>>, vector<1x128xbf16>
    tpu.vector_store %arg7[%c111, %c256_12], %0 {strides = array<i32>} : memref<128x384xbf16, #tpu.memory_space<vmem>>, vector<1x128xbf16>,
    %c112 = arith.constant 112 : index
    %c0_13 = arith.constant 0 : index
    %15 = vector.load %arg7[%c112, %c0_13] : memref<128x384xbf16, #tpu.memory_space<vmem>>, vector<1x128xbf16>
    tpu.vector_store %arg7[%c112, %c0_13], %0 {strides = array<i32>} : memref<128x384xbf16, #tpu.memory_space<vmem>>, vector<1x128xbf16>,
    %c127 = arith.constant 127 : index
    %c256_14 = arith.constant 256 : index
    %16 = vector.load %arg7[%c127, %c256_14] : memref<128x384xbf16, #tpu.memory_space<vmem>>, vector<1x128xbf16>
    tpu.vector_store %arg7[%c127, %c256_14], %0 {strides = array<i32>} : memref<128x384xbf16, #tpu.memory_space<vmem>>, vector<1x128xbf16>,
    %c0_15 = arith.constant 0 : index
    %c0_16 = arith.constant 0 : index
    %17 = vector.load %arg1[%c0_15, %c0_16] : memref<128x128xf32, #tpu.memory_space<vmem>>, vector<16x128xf32>
    %18 = arith.truncf %17 : vector<16x128xf32> to vector<16x128xbf16>
    %19 = vector.extract_strided_slice %18 {offsets = [0, 0], sizes = [15, 128], strides = [1, 1]} : vector<16x128xbf16> to vector<15x128xbf16>
    %c1 = arith.constant 1 : index
    %c0_17 = arith.constant 0 : index
    %20 = vector.load %arg7[%c1, %c0_17] : memref<128x384xbf16, #tpu.memory_space<vmem>>, vector<15x128xbf16>
    tpu.vector_store %arg7[%c1, %c0_17], %19 {strides = array<i32>} : memref<128x384xbf16, #tpu.memory_space<vmem>>, vector<15x128xbf16>,
    %c0_18 = arith.constant 0 : index
    %c128 = arith.constant 128 : index
    %21 = vector.load %arg7[%c0_18, %c128] : memref<128x384xbf16, #tpu.memory_space<vmem>>, vector<16x128xbf16>
    tpu.vector_store %arg7[%c0_18, %c128], %18 {strides = array<i32>} : memref<128x384xbf16, #tpu.memory_space<vmem>>, vector<16x128xbf16>,
    %22 = vector.extract_strided_slice %18 {offsets = [1, 0], sizes = [15, 128], strides = [1, 1]} : vector<16x128xbf16> to vector<15x128xbf16>
    %c0_19 = arith.constant 0 : index
    %c256_20 = arith.constant 256 : index
    %23 = vector.load %arg7[%c0_19, %c256_20] : memref<128x384xbf16, #tpu.memory_space<vmem>>, vector<15x128xbf16>
    tpu.vector_store %arg7[%c0_19, %c256_20], %22 {strides = array<i32>} : memref<128x384xbf16, #tpu.memory_space<vmem>>, vector<15x128xbf16>,
    %c16_21 = arith.constant 16 : index
    %c0_22 = arith.constant 0 : index
    %24 = vector.load %arg1[%c16_21, %c0_22] : memref<128x128xf32, #tpu.memory_space<vmem>>, vector<16x128xf32>
    %25 = arith.truncf %24 : vector<16x128xf32> to vector<16x128xbf16>
    %26 = vector.extract_strided_slice %25 {offsets = [0, 0], sizes = [15, 128], strides = [1, 1]} : vector<16x128xbf16> to vector<15x128xbf16>
    %c17 = arith.constant 17 : index
    %c0_23 = arith.constant 0 : index
    %27 = vector.load %arg7[%c17, %c0_23] : memref<128x384xbf16, #tpu.memory_space<vmem>>, vector<15x128xbf16>
    tpu.vector_store %arg7[%c17, %c0_23], %26 {strides = array<i32>} : memref<128x384xbf16, #tpu.memory_space<vmem>>, vector<15x128xbf16>,
    %c16_24 = arith.constant 16 : index
    %c128_25 = arith.constant 128 : index
    %28 = vector.load %arg7[%c16_24, %c128_25] : memref<128x384xbf16, #tpu.memory_space<vmem>>, vector<16x128xbf16>
    tpu.vector_store %arg7[%c16_24, %c128_25], %25 {strides = array<i32>} : memref<128x384xbf16, #tpu.memory_space<vmem>>, vector<16x128xbf16>,
    %29 = vector.extract_strided_slice %25 {offsets = [1, 0], sizes = [15, 128], strides = [1, 1]} : vector<16x128xbf16> to vector<15x128xbf16>
    %c16_26 = arith.constant 16 : index
    %c256_27 = arith.constant 256 : index
    %30 = vector.load %arg7[%c16_26, %c256_27] : memref<128x384xbf16, #tpu.memory_space<vmem>>, vector<15x128xbf16>
    tpu.vector_store %arg7[%c16_26, %c256_27], %29 {strides = array<i32>} : memref<128x384xbf16, #tpu.memory_space<vmem>>, vector<15x128xbf16>,
    %c32_28 = arith.constant 32 : index
    %c0_29 = arith.constant 0 : index
    %31 = vector.load %arg1[%c32_28, %c0_29] : memref<128x128xf32, #tpu.memory_space<vmem>>, vector<16x128xf32>
    %32 = arith.truncf %31 : vector<16x128xf32> to vector<16x128xbf16>
    %33 = vector.extract_strided_slice %32 {offsets = [0, 0], sizes = [15, 128], strides = [1, 1]} : vector<16x128xbf16> to vector<15x128xbf16>
    %c33 = arith.constant 33 : index
    %c0_30 = arith.constant 0 : index
    %34 = vector.load %arg7[%c33, %c0_30] : memref<128x384xbf16, #tpu.memory_space<vmem>>, vector<15x128xbf16>
    tpu.vector_store %arg7[%c33, %c0_30], %33 {strides = array<i32>} : memref<128x384xbf16, #tpu.memory_space<vmem>>, vector<15x128xbf16>,
    %c32_31 = arith.constant 32 : index
    %c128_32 = arith.constant 128 : index
    %35 = vector.load %arg7[%c32_31, %c128_32] : memref<128x384xbf16, #tpu.memory_space<vmem>>, vector<16x128xbf16>
    tpu.vector_store %arg7[%c32_31, %c128_32], %32 {strides = array<i32>} : memref<128x384xbf16, #tpu.memory_space<vmem>>, vector<16x128xbf16>,
    %36 = vector.extract_strided_slice %32 {offsets = [1, 0], sizes = [15, 128], strides = [1, 1]} : vector<16x128xbf16> to vector<15x128xbf16>
    %c32_33 = arith.constant 32 : index
    %c256_34 = arith.constant 256 : index
    %37 = vector.load %arg7[%c32_33, %c256_34] : memref<128x384xbf16, #tpu.memory_space<vmem>>, vector<15x128xbf16>
    tpu.vector_store %arg7[%c32_33, %c256_34], %36 {strides = array<i32>} : memref<128x384xbf16, #tpu.memory_space<vmem>>, vector<15x128xbf16>,
    %c48_35 = arith.constant 48 : index
    %c0_36 = arith.constant 0 : index
    %38 = vector.load %arg1[%c48_35, %c0_36] : memref<128x128xf32, #tpu.memory_space<vmem>>, vector<16x128xf32>
    %39 = arith.truncf %38 : vector<16x128xf32> to vector<16x128xbf16>
    %40 = vector.extract_strided_slice %39 {offsets = [0, 0], sizes = [15, 128], strides = [1, 1]} : vector<16x128xbf16> to vector<15x128xbf16>
    %c49 = arith.constant 49 : index
    %c0_37 = arith.constant 0 : index
    %41 = vector.load %arg7[%c49, %c0_37] : memref<128x384xbf16, #tpu.memory_space<vmem>>, vector<15x128xbf16>
    tpu.vector_store %arg7[%c49, %c0_37], %40 {strides = array<i32>} : memref<128x384xbf16, #tpu.memory_space<vmem>>, vector<15x128xbf16>,
    %c48_38 = arith.constant 48 : index
    %c128_39 = arith.constant 128 : index
    %42 = vector.load %arg7[%c48_38, %c128_39] : memref<128x384xbf16, #tpu.memory_space<vmem>>, vector<16x128xbf16>
    tpu.vector_store %arg7[%c48_38, %c128_39], %39 {strides = array<i32>} : memref<128x384xbf16, #tpu.memory_space<vmem>>, vector<16x128xbf16>,
    %43 = vector.extract_strided_slice %39 {offsets = [1, 0], sizes = [15, 128], strides = [1, 1]} : vector<16x128xbf16> to vector<15x128xbf16>
    %c48_40 = arith.constant 48 : index
    %c256_41 = arith.constant 256 : index
    %44 = vector.load %arg7[%c48_40, %c256_41] : memref<128x384xbf16, #tpu.memory_space<vmem>>, vector<15x128xbf16>
    tpu.vector_store %arg7[%c48_40, %c256_41], %43 {strides = array<i32>} : memref<128x384xbf16, #tpu.memory_space<vmem>>, vector<15x128xbf16>,
    %c64_42 = arith.constant 64 : index
    %c0_43 = arith.constant 0 : index
    %45 = vector.load %arg1[%c64_42, %c0_43] : memref<128x128xf32, #tpu.memory_space<vmem>>, vector<16x128xf32>
    %46 = arith.truncf %45 : vector<16x128xf32> to vector<16x128xbf16>
    %47 = vector.extract_strided_slice %46 {offsets = [0, 0], sizes = [15, 128], strides = [1, 1]} : vector<16x128xbf16> to vector<15x128xbf16>
    %c65 = arith.constant 65 : index
    %c0_44 = arith.constant 0 : index
    %48 = vector.load %arg7[%c65, %c0_44] : memref<128x384xbf16, #tpu.memory_space<vmem>>, vector<15x128xbf16>
    tpu.vector_store %arg7[%c65, %c0_44], %47 {strides = array<i32>} : memref<128x384xbf16, #tpu.memory_space<vmem>>, vector<15x128xbf16>,
    %c64_45 = arith.constant 64 : index
    %c128_46 = arith.constant 128 : index
    %49 = vector.load %arg7[%c64_45, %c128_46] : memref<128x384xbf16, #tpu.memory_space<vmem>>, vector<16x128xbf16>
    tpu.vector_store %arg7[%c64_45, %c128_46], %46 {strides = array<i32>} : memref<128x384xbf16, #tpu.memory_space<vmem>>, vector<16x128xbf16>,
    %50 = vector.extract_strided_slice %46 {offsets = [1, 0], sizes = [15, 128], strides = [1, 1]} : vector<16x128xbf16> to vector<15x128xbf16>
    %c64_47 = arith.constant 64 : index
    %c256_48 = arith.constant 256 : index
    %51 = vector.load %arg7[%c64_47, %c256_48] : memref<128x384xbf16, #tpu.memory_space<vmem>>, vector<15x128xbf16>
    tpu.vector_store %arg7[%c64_47, %c256_48], %50 {strides = array<i32>} : memref<128x384xbf16, #tpu.memory_space<vmem>>, vector<15x128xbf16>,
    %c80_49 = arith.constant 80 : index
    %c0_50 = arith.constant 0 : index
    %52 = vector.load %arg1[%c80_49, %c0_50] : memref<128x128xf32, #tpu.memory_space<vmem>>, vector<16x128xf32>
    %53 = arith.truncf %52 : vector<16x128xf32> to vector<16x128xbf16>
    %54 = vector.extract_strided_slice %53 {offsets = [0, 0], sizes = [15, 128], strides = [1, 1]} : vector<16x128xbf16> to vector<15x128xbf16>
    %c81 = arith.constant 81 : index
    %c0_51 = arith.constant 0 : index
    %55 = vector.load %arg7[%c81, %c0_51] : memref<128x384xbf16, #tpu.memory_space<vmem>>, vector<15x128xbf16>
    tpu.vector_store %arg7[%c81, %c0_51], %54 {strides = array<i32>} : memref<128x384xbf16, #tpu.memory_space<vmem>>, vector<15x128xbf16>,
    %c80_52 = arith.constant 80 : index
    %c128_53 = arith.constant 128 : index
    %56 = vector.load %arg7[%c80_52, %c128_53] : memref<128x384xbf16, #tpu.memory_space<vmem>>, vector<16x128xbf16>
    tpu.vector_store %arg7[%c80_52, %c128_53], %53 {strides = array<i32>} : memref<128x384xbf16, #tpu.memory_space<vmem>>, vector<16x128xbf16>,
    %57 = vector.extract_strided_slice %53 {offsets = [1, 0], sizes = [15, 128], strides = [1, 1]} : vector<16x128xbf16> to vector<15x128xbf16>
    %c80_54 = arith.constant 80 : index
    %c256_55 = arith.constant 256 : index
    %58 = vector.load %arg7[%c80_54, %c256_55] : memref<128x384xbf16, #tpu.memory_space<vmem>>, vector<15x128xbf16>
    tpu.vector_store %arg7[%c80_54, %c256_55], %57 {strides = array<i32>} : memref<128x384xbf16, #tpu.memory_space<vmem>>, vector<15x128xbf16>,
    %c96_56 = arith.constant 96 : index
    %c0_57 = arith.constant 0 : index
    %59 = vector.load %arg1[%c96_56, %c0_57] : memref<128x128xf32, #tpu.memory_space<vmem>>, vector<16x128xf32>
    %60 = arith.truncf %59 : vector<16x128xf32> to vector<16x128xbf16>
    %61 = vector.extract_strided_slice %60 {offsets = [0, 0], sizes = [15, 128], strides = [1, 1]} : vector<16x128xbf16> to vector<15x128xbf16>
    %c97 = arith.constant 97 : index
    %c0_58 = arith.constant 0 : index
    %62 = vector.load %arg7[%c97, %c0_58] : memref<128x384xbf16, #tpu.memory_space<vmem>>, vector<15x128xbf16>
    tpu.vector_store %arg7[%c97, %c0_58], %61 {strides = array<i32>} : memref<128x384xbf16, #tpu.memory_space<vmem>>, vector<15x128xbf16>,
    %c96_59 = arith.constant 96 : index
    %c128_60 = arith.constant 128 : index
    %63 = vector.load %arg7[%c96_59, %c128_60] : memref<128x384xbf16, #tpu.memory_space<vmem>>, vector<16x128xbf16>
    tpu.vector_store %arg7[%c96_59, %c128_60], %60 {strides = array<i32>} : memref<128x384xbf16, #tpu.memory_space<vmem>>, vector<16x128xbf16>,
    %64 = vector.extract_strided_slice %60 {offsets = [1, 0], sizes = [15, 128], strides = [1, 1]} : vector<16x128xbf16> to vector<15x128xbf16>
    %c96_61 = arith.constant 96 : index
    %c256_62 = arith.constant 256 : index
    %65 = vector.load %arg7[%c96_61, %c256_62] : memref<128x384xbf16, #tpu.memory_space<vmem>>, vector<15x128xbf16>
    tpu.vector_store %arg7[%c96_61, %c256_62], %64 {strides = array<i32>} : memref<128x384xbf16, #tpu.memory_space<vmem>>, vector<15x128xbf16>,
    %c112_63 = arith.constant 112 : index
    %c0_64 = arith.constant 0 : index
    %66 = vector.load %arg1[%c112_63, %c0_64] : memref<128x128xf32, #tpu.memory_space<vmem>>, vector<16x128xf32>
    %67 = arith.truncf %66 : vector<16x128xf32> to vector<16x128xbf16>
    %68 = vector.extract_strided_slice %67 {offsets = [0, 0], sizes = [15, 128], strides = [1, 1]} : vector<16x128xbf16> to vector<15x128xbf16>
    %c113 = arith.constant 113 : index
    %c0_65 = arith.constant 0 : index
    %69 = vector.load %arg7[%c113, %c0_65] : memref<128x384xbf16, #tpu.memory_space<vmem>>, vector<15x128xbf16>
    tpu.vector_store %arg7[%c113, %c0_65], %68 {strides = array<i32>} : memref<128x384xbf16, #tpu.memory_space<vmem>>, vector<15x128xbf16>,
    %c112_66 = arith.constant 112 : index
    %c128_67 = arith.constant 128 : index
    %70 = vector.load %arg7[%c112_66, %c128_67] : memref<128x384xbf16, #tpu.memory_space<vmem>>, vector<16x128xbf16>
    tpu.vector_store %arg7[%c112_66, %c128_67], %67 {strides = array<i32>} : memref<128x384xbf16, #tpu.memory_space<vmem>>, vector<16x128xbf16>,
    %71 = vector.extract_strided_slice %67 {offsets = [1, 0], sizes = [15, 128], strides = [1, 1]} : vector<16x128xbf16> to vector<15x128xbf16>
    %c112_68 = arith.constant 112 : index
    %c256_69 = arith.constant 256 : index
    %72 = vector.load %arg7[%c112_68, %c256_69] : memref<128x384xbf16, #tpu.memory_space<vmem>>, vector<15x128xbf16>
    tpu.vector_store %arg7[%c112_68, %c256_69], %71 {strides = array<i32>} : memref<128x384xbf16, #tpu.memory_space<vmem>>, vector<15x128xbf16>,
    %c0_70 = arith.constant 0 : index
    %c0_71 = arith.constant 0 : index
    %73 = vector.load %arg7[%c0_70, %c0_71] : memref<128x384xbf16, #tpu.memory_space<vmem>>, vector<128x384xbf16>
    %c0_72 = arith.constant 0 : index
    %c0_73 = arith.constant 0 : index
    %74 = vector.load %arg2[%c0_72, %c0_73] : memref<384x128xbf16, #tpu.memory_space<vmem>>, vector<384x128xbf16>
    %cst_74 = arith.constant dense<0.000000e+00> : vector<128x128xf32>
    %75 = tpu.matmul %73, %74, %cst_74 {dimension_numbers = #tpu.dot_dimension_numbers<[1], [0], [0], [1], [0, 0, 1, 1], [], []>} : vector<128x384xbf16>, vector<384x128xbf16>, vector<128x128xf32> -> vector<128x128xf32>
    %c0_75 = arith.constant 0 : index
    %c0_76 = arith.constant 0 : index
    %76 = vector.load %arg3[%c0_75, %c0_76] : memref<1x128xf32, #tpu.memory_space<vmem>>, vector<1x128xf32>
    %77 = vector.broadcast %76 : vector<1x128xf32> to vector<128x128xf32>
    %78 = arith.addf %75, %77 : vector<128x128xf32>
    %cst_77 = arith.constant 0.000000e+00 : f32
    %79 = vector.broadcast %cst_77 : f32 to vector<128x128xf32>
    %80 = arith.maximumf %78, %79 : vector<128x128xf32>
    %81 = arith.truncf %80 : vector<128x128xf32> to vector<128x128xbf16>
    %82 = vector.extract_strided_slice %81 {offsets = [0, 0], sizes = [16, 128], strides = [1, 1]} : vector<128x128xbf16> to vector<16x128xbf16>
    %83 = vector.extract_strided_slice %82 {offsets = [0, 0], sizes = [15, 128], strides = [1, 1]} : vector<16x128xbf16> to vector<15x128xbf16>
    %c1_78 = arith.constant 1 : index
    %c0_79 = arith.constant 0 : index
    %84 = vector.load %arg7[%c1_78, %c0_79] : memref<128x384xbf16, #tpu.memory_space<vmem>>, vector<15x128xbf16>
    tpu.vector_store %arg7[%c1_78, %c0_79], %83 {strides = array<i32>} : memref<128x384xbf16, #tpu.memory_space<vmem>>, vector<15x128xbf16>,
    %c0_80 = arith.constant 0 : index
    %c128_81 = arith.constant 128 : index
    %85 = vector.load %arg7[%c0_80, %c128_81] : memref<128x384xbf16, #tpu.memory_space<vmem>>, vector<16x128xbf16>
    tpu.vector_store %arg7[%c0_80, %c128_81], %82 {strides = array<i32>} : memref<128x384xbf16, #tpu.memory_space<vmem>>, vector<16x128xbf16>,
    %86 = vector.extract_strided_slice %82 {offsets = [1, 0], sizes = [15, 128], strides = [1, 1]} : vector<16x128xbf16> to vector<15x128xbf16>
    %c0_82 = arith.constant 0 : index
    %c256_83 = arith.constant 256 : index
    %87 = vector.load %arg7[%c0_82, %c256_83] : memref<128x384xbf16, #tpu.memory_space<vmem>>, vector<15x128xbf16>
    tpu.vector_store %arg7[%c0_82, %c256_83], %86 {strides = array<i32>} : memref<128x384xbf16, #tpu.memory_space<vmem>>, vector<15x128xbf16>,
    %88 = vector.extract_strided_slice %81 {offsets = [16, 0], sizes = [16, 128], strides = [1, 1]} : vector<128x128xbf16> to vector<16x128xbf16>
    %89 = vector.extract_strided_slice %88 {offsets = [0, 0], sizes = [15, 128], strides = [1, 1]} : vector<16x128xbf16> to vector<15x128xbf16>
    %c17_84 = arith.constant 17 : index
    %c0_85 = arith.constant 0 : index
    %90 = vector.load %arg7[%c17_84, %c0_85] : memref<128x384xbf16, #tpu.memory_space<vmem>>, vector<15x128xbf16>
    tpu.vector_store %arg7[%c17_84, %c0_85], %89 {strides = array<i32>} : memref<128x384xbf16, #tpu.memory_space<vmem>>, vector<15x128xbf16>,
    %c16_86 = arith.constant 16 : index
    %c128_87 = arith.constant 128 : index
    %91 = vector.load %arg7[%c16_86, %c128_87] : memref<128x384xbf16, #tpu.memory_space<vmem>>, vector<16x128xbf16>
    tpu.vector_store %arg7[%c16_86, %c128_87], %88 {strides = array<i32>} : memref<128x384xbf16, #tpu.memory_space<vmem>>, vector<16x128xbf16>,
    %92 = vector.extract_strided_slice %88 {offsets = [1, 0], sizes = [15, 128], strides = [1, 1]} : vector<16x128xbf16> to vector<15x128xbf16>
    %c16_88 = arith.constant 16 : index
    %c256_89 = arith.constant 256 : index
    %93 = vector.load %arg7[%c16_88, %c256_89] : memref<128x384xbf16, #tpu.memory_space<vmem>>, vector<15x128xbf16>
    tpu.vector_store %arg7[%c16_88, %c256_89], %92 {strides = array<i32>} : memref<128x384xbf16, #tpu.memory_space<vmem>>, vector<15x128xbf16>,
    %94 = vector.extract_strided_slice %81 {offsets = [32, 0], sizes = [16, 128], strides = [1, 1]} : vector<128x128xbf16> to vector<16x128xbf16>
    %95 = vector.extract_strided_slice %94 {offsets = [0, 0], sizes = [15, 128], strides = [1, 1]} : vector<16x128xbf16> to vector<15x128xbf16>
    %c33_90 = arith.constant 33 : index
    %c0_91 = arith.constant 0 : index
    %96 = vector.load %arg7[%c33_90, %c0_91] : memref<128x384xbf16, #tpu.memory_space<vmem>>, vector<15x128xbf16>
    tpu.vector_store %arg7[%c33_90, %c0_91], %95 {strides = array<i32>} : memref<128x384xbf16, #tpu.memory_space<vmem>>, vector<15x128xbf16>,
    %c32_92 = arith.constant 32 : index
    %c128_93 = arith.constant 128 : index
    %97 = vector.load %arg7[%c32_92, %c128_93] : memref<128x384xbf16, #tpu.memory_space<vmem>>, vector<16x128xbf16>
    tpu.vector_store %arg7[%c32_92, %c128_93], %94 {strides = array<i32>} : memref<128x384xbf16, #tpu.memory_space<vmem>>, vector<16x128xbf16>,
    %98 = vector.extract_strided_slice %94 {offsets = [1, 0], sizes = [15, 128], strides = [1, 1]} : vector<16x128xbf16> to vector<15x128xbf16>
    %c32_94 = arith.constant 32 : index
    %c256_95 = arith.constant 256 : index
    %99 = vector.load %arg7[%c32_94, %c256_95] : memref<128x384xbf16, #tpu.memory_space<vmem>>, vector<15x128xbf16>
    tpu.vector_store %arg7[%c32_94, %c256_95], %98 {strides = array<i32>} : memref<128x384xbf16, #tpu.memory_space<vmem>>, vector<15x128xbf16>,
    %100 = vector.extract_strided_slice %81 {offsets = [48, 0], sizes = [16, 128], strides = [1, 1]} : vector<128x128xbf16> to vector<16x128xbf16>
    %101 = vector.extract_strided_slice %100 {offsets = [0, 0], sizes = [15, 128], strides = [1, 1]} : vector<16x128xbf16> to vector<15x128xbf16>
    %c49_96 = arith.constant 49 : index
    %c0_97 = arith.constant 0 : index
    %102 = vector.load %arg7[%c49_96, %c0_97] : memref<128x384xbf16, #tpu.memory_space<vmem>>, vector<15x128xbf16>
    tpu.vector_store %arg7[%c49_96, %c0_97], %101 {strides = array<i32>} : memref<128x384xbf16, #tpu.memory_space<vmem>>, vector<15x128xbf16>,
    %c48_98 = arith.constant 48 : index
    %c128_99 = arith.constant 128 : index
    %103 = vector.load %arg7[%c48_98, %c128_99] : memref<128x384xbf16, #tpu.memory_space<vmem>>, vector<16x128xbf16>
    tpu.vector_store %arg7[%c48_98, %c128_99], %100 {strides = array<i32>} : memref<128x384xbf16, #tpu.memory_space<vmem>>, vector<16x128xbf16>,
    %104 = vector.extract_strided_slice %100 {offsets = [1, 0], sizes = [15, 128], strides = [1, 1]} : vector<16x128xbf16> to vector<15x128xbf16>
    %c48_100 = arith.constant 48 : index
    %c256_101 = arith.constant 256 : index
    %105 = vector.load %arg7[%c48_100, %c256_101] : memref<128x384xbf16, #tpu.memory_space<vmem>>, vector<15x128xbf16>
    tpu.vector_store %arg7[%c48_100, %c256_101], %104 {strides = array<i32>} : memref<128x384xbf16, #tpu.memory_space<vmem>>, vector<15x128xbf16>,
    %106 = vector.extract_strided_slice %81 {offsets = [64, 0], sizes = [16, 128], strides = [1, 1]} : vector<128x128xbf16> to vector<16x128xbf16>
    %107 = vector.extract_strided_slice %106 {offsets = [0, 0], sizes = [15, 128], strides = [1, 1]} : vector<16x128xbf16> to vector<15x128xbf16>
    %c65_102 = arith.constant 65 : index
    %c0_103 = arith.constant 0 : index
    %108 = vector.load %arg7[%c65_102, %c0_103] : memref<128x384xbf16, #tpu.memory_space<vmem>>, vector<15x128xbf16>
    tpu.vector_store %arg7[%c65_102, %c0_103], %107 {strides = array<i32>} : memref<128x384xbf16, #tpu.memory_space<vmem>>, vector<15x128xbf16>,
    %c64_104 = arith.constant 64 : index
    %c128_105 = arith.constant 128 : index
    %109 = vector.load %arg7[%c64_104, %c128_105] : memref<128x384xbf16, #tpu.memory_space<vmem>>, vector<16x128xbf16>
    tpu.vector_store %arg7[%c64_104, %c128_105], %106 {strides = array<i32>} : memref<128x384xbf16, #tpu.memory_space<vmem>>, vector<16x128xbf16>,
    %110 = vector.extract_strided_slice %106 {offsets = [1, 0], sizes = [15, 128], strides = [1, 1]} : vector<16x128xbf16> to vector<15x128xbf16>
    %c64_106 = arith.constant 64 : index
    %c256_107 = arith.constant 256 : index
    %111 = vector.load %arg7[%c64_106, %c256_107] : memref<128x384xbf16, #tpu.memory_space<vmem>>, vector<15x128xbf16>
    tpu.vector_store %arg7[%c64_106, %c256_107], %110 {strides = array<i32>} : memref<128x384xbf16, #tpu.memory_space<vmem>>, vector<15x128xbf16>,
    %112 = vector.extract_strided_slice %81 {offsets = [80, 0], sizes = [16, 128], strides = [1, 1]} : vector<128x128xbf16> to vector<16x128xbf16>
    %113 = vector.extract_strided_slice %112 {offsets = [0, 0], sizes = [15, 128], strides = [1, 1]} : vector<16x128xbf16> to vector<15x128xbf16>
    %c81_108 = arith.constant 81 : index
    %c0_109 = arith.constant 0 : index
    %114 = vector.load %arg7[%c81_108, %c0_109] : memref<128x384xbf16, #tpu.memory_space<vmem>>, vector<15x128xbf16>
    tpu.vector_store %arg7[%c81_108, %c0_109], %113 {strides = array<i32>} : memref<128x384xbf16, #tpu.memory_space<vmem>>, vector<15x128xbf16>,
    %c80_110 = arith.constant 80 : index
    %c128_111 = arith.constant 128 : index
    %115 = vector.load %arg7[%c80_110, %c128_111] : memref<128x384xbf16, #tpu.memory_space<vmem>>, vector<16x128xbf16>
    tpu.vector_store %arg7[%c80_110, %c128_111], %112 {strides = array<i32>} : memref<128x384xbf16, #tpu.memory_space<vmem>>, vector<16x128xbf16>,
    %116 = vector.extract_strided_slice %112 {offsets = [1, 0], sizes = [15, 128], strides = [1, 1]} : vector<16x128xbf16> to vector<15x128xbf16>
    %c80_112 = arith.constant 80 : index
    %c256_113 = arith.constant 256 : index
    %117 = vector.load %arg7[%c80_112, %c256_113] : memref<128x384xbf16, #tpu.memory_space<vmem>>, vector<15x128xbf16>
    tpu.vector_store %arg7[%c80_112, %c256_113], %116 {strides = array<i32>} : memref<128x384xbf16, #tpu.memory_space<vmem>>, vector<15x128xbf16>,
    %118 = vector.extract_strided_slice %81 {offsets = [96, 0], sizes = [16, 128], strides = [1, 1]} : vector<128x128xbf16> to vector<16x128xbf16>
    %119 = vector.extract_strided_slice %118 {offsets = [0, 0], sizes = [15, 128], strides = [1, 1]} : vector<16x128xbf16> to vector<15x128xbf16>
    %c97_114 = arith.constant 97 : index
    %c0_115 = arith.constant 0 : index
    %120 = vector.load %arg7[%c97_114, %c0_115] : memref<128x384xbf16, #tpu.memory_space<vmem>>, vector<15x128xbf16>
    tpu.vector_store %arg7[%c97_114, %c0_115], %119 {strides = array<i32>} : memref<128x384xbf16, #tpu.memory_space<vmem>>, vector<15x128xbf16>,
    %c96_116 = arith.constant 96 : index
    %c128_117 = arith.constant 128 : index
    %121 = vector.load %arg7[%c96_116, %c128_117] : memref<128x384xbf16, #tpu.memory_space<vmem>>, vector<16x128xbf16>
    tpu.vector_store %arg7[%c96_116, %c128_117], %118 {strides = array<i32>} : memref<128x384xbf16, #tpu.memory_space<vmem>>, vector<16x128xbf16>,
    %122 = vector.extract_strided_slice %118 {offsets = [1, 0], sizes = [15, 128], strides = [1, 1]} : vector<16x128xbf16> to vector<15x128xbf16>
    %c96_118 = arith.constant 96 : index
    %c256_119 = arith.constant 256 : index
    %123 = vector.load %arg7[%c96_118, %c256_119] : memref<128x384xbf16, #tpu.memory_space<vmem>>, vector<15x128xbf16>
    tpu.vector_store %arg7[%c96_118, %c256_119], %122 {strides = array<i32>} : memref<128x384xbf16, #tpu.memory_space<vmem>>, vector<15x128xbf16>,
    %124 = vector.extract_strided_slice %81 {offsets = [112, 0], sizes = [16, 128], strides = [1, 1]} : vector<128x128xbf16> to vector<16x128xbf16>
    %125 = vector.extract_strided_slice %124 {offsets = [0, 0], sizes = [15, 128], strides = [1, 1]} : vector<16x128xbf16> to vector<15x128xbf16>
    %c113_120 = arith.constant 113 : index
    %c0_121 = arith.constant 0 : index
    %126 = vector.load %arg7[%c113_120, %c0_121] : memref<128x384xbf16, #tpu.memory_space<vmem>>, vector<15x128xbf16>
    tpu.vector_store %arg7[%c113_120, %c0_121], %125 {strides = array<i32>} : memref<128x384xbf16, #tpu.memory_space<vmem>>, vector<15x128xbf16>,
    %c112_122 = arith.constant 112 : index
    %c128_123 = arith.constant 128 : index
    %127 = vector.load %arg7[%c112_122, %c128_123] : memref<128x384xbf16, #tpu.memory_space<vmem>>, vector<16x128xbf16>
    tpu.vector_store %arg7[%c112_122, %c128_123], %124 {strides = array<i32>} : memref<128x384xbf16, #tpu.memory_space<vmem>>, vector<16x128xbf16>,
    %128 = vector.extract_strided_slice %124 {offsets = [1, 0], sizes = [15, 128], strides = [1, 1]} : vector<16x128xbf16> to vector<15x128xbf16>
    %c112_124 = arith.constant 112 : index
    %c256_125 = arith.constant 256 : index
    %129 = vector.load %arg7[%c112_124, %c256_125] : memref<128x384xbf16, #tpu.memory_space<vmem>>, vector<15x128xbf16>
    tpu.vector_store %arg7[%c112_124, %c256_125], %128 {strides = array<i32>} : memref<128x384xbf16, #tpu.memory_space<vmem>>, vector<15x128xbf16>,
    %c0_126 = arith.constant 0 : index
    %c0_127 = arith.constant 0 : index
    %130 = vector.load %arg7[%c0_126, %c0_127] : memref<128x384xbf16, #tpu.memory_space<vmem>>, vector<128x384xbf16>
    %c0_128 = arith.constant 0 : index
    %c0_129 = arith.constant 0 : index
    %131 = vector.load %arg4[%c0_128, %c0_129] : memref<384x128xbf16, #tpu.memory_space<vmem>>, vector<384x128xbf16>
    %cst_130 = arith.constant dense<0.000000e+00> : vector<128x128xf32>
    %132 = tpu.matmul %130, %131, %cst_130 {dimension_numbers = #tpu.dot_dimension_numbers<[1], [0], [0], [1], [0, 0, 1, 1], [], []>} : vector<128x384xbf16>, vector<384x128xbf16>, vector<128x128xf32> -> vector<128x128xf32>
    %c0_131 = arith.constant 0 : index
    %c0_132 = arith.constant 0 : index
    %133 = vector.load %arg5[%c0_131, %c0_132] : memref<1x128xf32, #tpu.memory_space<vmem>>, vector<1x128xf32>
    %134 = vector.broadcast %133 : vector<1x128xf32> to vector<128x128xf32>
    %135 = arith.addf %132, %134 : vector<128x128xf32>
    %c0_133 = arith.constant 0 : index
    %c0_134 = arith.constant 0 : index
    %136 = vector.load %arg1[%c0_133, %c0_134] : memref<128x128xf32, #tpu.memory_space<vmem>>, vector<128x128xf32>
    %137 = arith.addf %135, %136 : vector<128x128xf32>
    %cst_135 = arith.constant 0.000000e+00 : f32
    %138 = vector.broadcast %cst_135 : f32 to vector<128x128xf32>
    %139 = arith.maximumf %137, %138 : vector<128x128xf32>
    %c0_136 = arith.constant 0 : index
    %c0_137 = arith.constant 0 : index
    %140 = vector.load %arg6[%c0_136, %c0_137] : memref<128x128xf32, #tpu.memory_space<vmem>>, vector<128x128xf32>
    tpu.vector_store %arg6[%c0_136, %c0_137], %139 {strides = array<i32>} : memref<128x128xf32, #tpu.memory_space<vmem>>, vector<128x128xf32>,
    return
  }
  func.func @transform_0(%arg0: i32) -> (i32, i32) {
    %c0_i32 = arith.constant 0 : i32
    %c0_i32_0 = arith.constant 0 : i32
    return %arg0, %c0_i32 : i32, i32
  }
  func.func @transform_1(%arg0: i32) -> (i32, i32) {
    %c0_i32 = arith.constant 0 : i32
    %c0_i32_0 = arith.constant 0 : i32
    %c0_i32_1 = arith.constant 0 : i32
    return %c0_i32, %c0_i32_0 : i32, i32
  }
  func.func @transform_2(%arg0: i32) -> (i32, i32) {
    %c0_i32 = arith.constant 0 : i32
    %c0_i32_0 = arith.constant 0 : i32
    %c0_i32_1 = arith.constant 0 : i32
    return %c0_i32, %c0_i32_0 : i32, i32
  }
  func.func @transform_3(%arg0: i32) -> (i32, i32) {
    %c0_i32 = arith.constant 0 : i32
    %c0_i32_0 = arith.constant 0 : i32
    %c0_i32_1 = arith.constant 0 : i32
    return %c0_i32, %c0_i32_0 : i32, i32
  }
  func.func @transform_4(%arg0: i32) -> (i32, i32) {
    %c0_i32 = arith.constant 0 : i32
    %c0_i32_0 = arith.constant 0 : i32
    %c0_i32_1 = arith.constant 0 : i32
    return %c0_i32, %c0_i32_0 : i32, i32
  }
  func.func @transform_5(%arg0: i32) -> (i32, i32) {
    %c0_i32 = arith.constant 0 : i32
    %c0_i32_0 = arith.constant 0 : i32
    return %arg0, %c0_i32 : i32, i32
  }
}

</mosaic_0001>

<llo_original>
// kernel: forward.1
$region0: #{forward.1}
  #allocation0 [shape = 'u32[]', space=smem, size = 0x4, offset = 0x4, fixed_abs, tag = 'smem constant byte address 0x4 - core index']
  #allocation1 [shape = 'u32[72,128]{1,0:T(1,128)}', space=vmem, size = 0x9000, scoped, tag = 'internal scratch']
  #allocation2 [shape = 'bf16[128,384]{1,0:T(8,128)(2,1)}', space=vmem, size = 0x18000, scoped, tag = 'scratch operand']
  %s0 = inlined_call_operand.vmem [shape: f32[256,128], index: 0, kind: input, shape index: {}]
  %s1 = inlined_call_operand.vmem [shape: bf16[384,128], index: 1, kind: input, shape index: {}]
  %s2 = inlined_call_operand.vmem [shape: f32[1,128], index: 2, kind: input, shape index: {}]
  %s3 = inlined_call_operand.vmem [shape: bf16[384,128], index: 3, kind: input, shape index: {}]
  %s4 = inlined_call_operand.vmem [shape: f32[1,128], index: 4, kind: input, shape index: {}]
  %s5 = inlined_call_operand.vmem [shape: f32[256,128], index: 5, kind: output, shape index: {}]
  %s6 = sld [smem:[#allocation0]]
  $region53: #{forward.1} parent=0
    _
  %s8 = ssub.s32 1, %s6
  %s9 = scalar_select 0, %s8, %s6
  loop: start=0, step=1, limit=4
  $region2: #{forward.1} parent=0 // loop_pre_header
    _
  $region3: #{forward.1} parent=0 // loop_header
    %s11 = sphi 0, %s15
    %p12 = scmp.ge.s32.totalorder %s11, 4
    %s21 = sphi 0, %s23
    %s24 = sphi 0, %s21
    %s25 = sphi 0, %s24
    %s41 = sphi 0, %s25
    %s45 = sphi 0, %s45
    %s47 = sphi 0, %s45
    %s48 = sphi 0, %s47
    %s62 = sphi 0, %s48
    %s66 = sphi 0, %s66
    %s68 = sphi 0, %s66
    %s69 = sphi 0, %s68
    %s83 = sphi 0, %s69
    %s87 = sphi 0, %s87
    %s89 = sphi 0, %s87
    %s90 = sphi 0, %s89
    %s104 = sphi 0, %s90
    %s108 = sphi 0, %s108
    %s110 = sphi 0, %s108
    %s111 = sphi 0, %s110
    %s125 = sphi 0, %s111
    %s131 = sphi 0, %s133
    %s134 = sphi 0, %s131
    %s135 = sphi 0, %s134
    %s151 = sphi 0, %s135
  $region4: #{forward.1} parent=0 // loop_header_branch
    %14 = sbr.rel (%p12) target = $region8
  $region5: #{forward.1} parent=0 // loop_body
    %s16 = ssub.s32 %s11, 1
    %s17 = ssub.s32 %s11, 2
    %s18 = sadd.s32 %s11, 1
    %s19 = ssub.s32 %s11, %s18
    %p20 = scmp.eq.s32.totalorder %s19, 0
    %s22 = sadd.s32 %s21, 1
    %s23 = scalar_select %p20, %s21, %s22
    %p26 = pneg %p20
    %p27 = scmp.eq.s32.totalorder %s11, 1
    %p28 = por %p26, %p27
    %p29 = scmp.ne.s32.totalorder %s21, %s24
    %p30 = scmp.eq.s32.totalorder %s11, 0
    %p31 = por %p29, %p30
    %p32 = scmp.ne.s32.totalorder %s21, %s24
    %p33 = scmp.eq.s32.totalorder %s16, 1
    %p34 = por %p32, %p33
    %p35 = scmp.ne.s32.totalorder %s24, %s25
    %p36 = scmp.eq.s32.totalorder %s16, 0
    %p37 = por %p35, %p36
    %p38 = scmp.ne.s32.totalorder %s24, %s25
    %p39 = scmp.eq.s32.totalorder %s17, 1
    %p40 = por %p38, %p39
    %p42 = scmp.ne.s32.totalorder %s25, %s41
    %p43 = scmp.eq.s32.totalorder %s17, 0
    %p44 = por %p42, %p43
    %s46 = sadd.s32 %s45, 1
    %p49 = scmp.eq.s32.totalorder %s11, 1
    %p50 = scmp.ne.s32.totalorder %s45, %s47
    %p51 = scmp.eq.s32.totalorder %s11, 0
    %p52 = por %p50, %p51
    %p53 = scmp.ne.s32.totalorder %s45, %s47
    %p54 = scmp.eq.s32.totalorder %s16, 1
    %p55 = por %p53, %p54
    %p56 = scmp.ne.s32.totalorder %s47, %s48
    %p57 = scmp.eq.s32.totalorder %s16, 0
    %p58 = por %p56, %p57
    %p59 = scmp.ne.s32.totalorder %s47, %s48
    %p60 = scmp.eq.s32.totalorder %s17, 1
    %p61 = por %p59, %p60
    %p63 = scmp.ne.s32.totalorder %s48, %s62
    %p64 = scmp.eq.s32.totalorder %s17, 0
    %p65 = por %p63, %p64
    %s67 = sadd.s32 %s66, 1
    %p70 = scmp.eq.s32.totalorder %s11, 1
    %p71 = scmp.ne.s32.totalorder %s66, %s68
    %p72 = scmp.eq.s32.totalorder %s11, 0
    %p73 = por %p71, %p72
    %p74 = scmp.ne.s32.totalorder %s66, %s68
    %p75 = scmp.eq.s32.totalorder %s16, 1
    %p76 = por %p74, %p75
    %p77 = scmp.ne.s32.totalorder %s68, %s69
    %p78 = scmp.eq.s32.totalorder %s16, 0
    %p79 = por %p77, %p78
    %p80 = scmp.ne.s32.totalorder %s68, %s69
    %p81 = scmp.eq.s32.totalorder %s17, 1
    %p82 = por %p80, %p81
    %p84 = scmp.ne.s32.totalorder %s69, %s83
    %p85 = scmp.eq.s32.totalorder %s17, 0
    %p86 = por %p84, %p85
    %s88 = sadd.s32 %s87, 1
    %p91 = scmp.eq.s32.totalorder %s11, 1
    %p92 = scmp.ne.s32.totalorder %s87, %s89
    %p93 = scmp.eq.s32.totalorder %s11, 0
    %p94 = por %p92, %p93
    %p95 = scmp.ne.s32.totalorder %s87, %s89
    %p96 = scmp.eq.s32.totalorder %s16, 1
    %p97 = por %p95, %p96
    %p98 = scmp.ne.s32.totalorder %s89, %s90
    %p99 = scmp.eq.s32.totalorder %s16, 0
    %p100 = por %p98, %p99
    %p101 = scmp.ne.s32.totalorder %s89, %s90
    %p102 = scmp.eq.s32.totalorder %s17, 1
    %p103 = por %p101, %p102
    %p105 = scmp.ne.s32.totalorder %s90, %s104
    %p106 = scmp.eq.s32.totalorder %s17, 0
    %p107 = por %p105, %p106
    %s109 = sadd.s32 %s108, 1
    %p112 = scmp.eq.s32.totalorder %s11, 1
    %p113 = scmp.ne.s32.totalorder %s108, %s110
    %p114 = scmp.eq.s32.totalorder %s11, 0
    %p115 = por %p113, %p114
    %p116 = scmp.ne.s32.totalorder %s108, %s110
    %p117 = scmp.eq.s32.totalorder %s16, 1
    %p118 = por %p116, %p117
    %p119 = scmp.ne.s32.totalorder %s110, %s111
    %p120 = scmp.eq.s32.totalorder %s16, 0
    %p121 = por %p119, %p120
    %p122 = scmp.ne.s32.totalorder %s110, %s111
    %p123 = scmp.eq.s32.totalorder %s17, 1
    %p124 = por %p122, %p123
    %p126 = scmp.ne.s32.totalorder %s111, %s125
    %p127 = scmp.eq.s32.totalorder %s17, 0
    %p128 = por %p126, %p127
    %s129 = ssub.s32 %s11, %s18
    %p130 = scmp.eq.s32.totalorder %s129, 0
    %s132 = sadd.s32 %s131, 1
    %s133 = scalar_select %p130, %s131, %s132
    %p136 = pneg %p130
    %p137 = scmp.eq.s32.totalorder %s11, 1
    %p138 = por %p136, %p137
    %p139 = scmp.ne.s32.totalorder %s131, %s134
    %p140 = scmp.eq.s32.totalorder %s11, 0
    %p141 = por %p139, %p140
    %p142 = scmp.ne.s32.totalorder %s131, %s134
    %p143 = scmp.eq.s32.totalorder %s16, 1
    %p144 = por %p142, %p143
    %p145 = scmp.ne.s32.totalorder %s134, %s135
    %p146 = scmp.eq.s32.totalorder %s16, 0
    %p147 = por %p145, %p146
    %p148 = scmp.ne.s32.totalorder %s134, %s135
    %p149 = scmp.eq.s32.totalorder %s17, 1
    %p150 = por %p148, %p149
    %p152 = scmp.ne.s32.totalorder %s135, %s151
    %p153 = scmp.eq.s32.totalorder %s17, 0
    %p154 = por %p152, %p153
    %p155 = scmp.le.s32.totalorder 1, %s11
    %p156 = scmp.lt.s32.totalorder %s11, 3
    %p157 = pnand %p155, %p156
    %p158 = pneg %p157
    // Predicated region
    $region9: #{forward.1} parent=5 // pred_check
      _
    $region10: #{forward.1} parent=5 // pred_check_branch
      %160 = sbr.rel (%p157) target = $region12
    $region11: #{forward.1} parent=5 // pred_region
      %s161 = ssub.s32 %s11, 1
      // Predicated region
      $region13: #{forward.1} parent=11 // pred_check
        %p162 = pneg %p58
      $region14: #{forward.1} parent=11 // pred_check_branch
        %164 = sbr.rel (%p162) target = $region16
      $region15: #{forward.1} parent=11 // pred_region
        _
      $region16: #{forward.1} parent=11 // pred_fallthru
        _
      // Predicated region
      $region17: #{forward.1} parent=11 // pred_check
        %p165 = pneg %p79
      $region18: #{forward.1} parent=11 // pred_check_branch
        %167 = sbr.rel (%p165) target = $region20
      $region19: #{forward.1} parent=11 // pred_region
        _
      $region20: #{forward.1} parent=11 // pred_fallthru
        _
      // Predicated region
      $region21: #{forward.1} parent=11 // pred_check
        %p168 = pneg %p100
      $region22: #{forward.1} parent=11 // pred_check_branch
        %170 = sbr.rel (%p168) target = $region24
      $region23: #{forward.1} parent=11 // pred_region
        _
      $region24: #{forward.1} parent=11 // pred_fallthru
        _
      // Predicated region
      $region25: #{forward.1} parent=11 // pred_check
        %p171 = pneg %p121
      $region26: #{forward.1} parent=11 // pred_check_branch
        %173 = sbr.rel (%p171) target = $region28
      $region27: #{forward.1} parent=11 // pred_region
        _
      $region28: #{forward.1} parent=11 // pred_fallthru
        _
    $region12: #{forward.1} parent=5 // pred_fallthru
      _
    %p174 = scmp.lt.s32.totalorder %s11, 2
    // Predicated region
    $region29: #{forward.1} parent=5 // pred_check
      %p175 = pneg %p174
    $region30: #{forward.1} parent=5 // pred_check_branch
      %177 = sbr.rel (%p175) target = $region32
    $region31: #{forward.1} parent=5 // pred_region
      // Predicated region
      $region33: #{forward.1} parent=31 // pred_check
        %p178 = pneg %p31
      $region34: #{forward.1} parent=31 // pred_check_branch
        %180 = sbr.rel (%p178) target = $region36
      $region35: #{forward.1} parent=31 // pred_region
        %s181 = smul.u32 16, %s11
        %p182 = scmp.lt.s32.totalorder %s181, 31
        %s183 = scalar_select %p182, %s181, 31
        %s184 = smul.addr %s183, 8
        %s185 = scalar_lea.vmem %s0, %s184
        %s186 = smul.u32 16, %s11
      $region36: #{forward.1} parent=31 // pred_fallthru
        _
    $region32: #{forward.1} parent=5 // pred_fallthru
      _
    %p187 = scmp.le.s32.totalorder 1, %s11
    %p188 = scmp.lt.s32.totalorder %s11, 3
    %p189 = pnand %p187, %p188
    %p190 = pneg %p189
    // Predicated region
    $region37: #{forward.1} parent=5 // pred_check
      _
    $region38: #{forward.1} parent=5 // pred_check_branch
      %192 = sbr.rel (%p189) target = $region40
    $region39: #{forward.1} parent=5 // pred_region
      %s193 = ssub.s32 %s11, 1
      %s194 = smul.u32 16, %s16
      %p195 = scmp.lt.s32.totalorder %s194, 31
      %s196 = scalar_select %p195, %s194, 31
      %s197 = smul.addr %s196, 8
      %s198 = scalar_lea.vmem %s0, %s197
      %p199 = pneg %p37
      %p200 = pneg %p34
      %p201 = pneg %p58
      %p202 = pneg %p55
      %p203 = pneg %p79
      %p204 = pneg %p76
      %p205 = pneg %p100
      %p206 = pneg %p97
      %p207 = pneg %p121
      %p208 = pneg %p118
      %p209 = pneg %p147
      %p210 = pneg %p144
      %s211 = smul.u32 16, %s16
      %p212 = scmp.lt.s32.totalorder %s211, 31
      %s213 = scalar_select %p212, %s211, 31
      %s214 = smul.addr %s213, 8
      %s215 = scalar_lea.vmem %s5, %s214
      %s216 = smul.u32 16, %s16
      %p217 = scmp.lt.s32.totalorder %s216, 31
      %s218 = scalar_select %p217, %s216, 31
      %s219 = smul.addr %s218, 8
      %s220 = scalar_lea.vmem %s0, %s219
      %s221 = smul.u32 16, %s16
      %s222 = smul.u32 16, %s16
      %p223 = scmp.lt.s32.totalorder %s222, 31
      %s224 = scalar_select %p223, %s222, 31
      %s225 = smul.addr %s224, 8
      %s226 = scalar_lea.vmem %s5, %s225
      %s227 = smul.u32 16, %s16
      %vm229 = vcmask 1040384
      %vm230 = vsmask.f32 256
      %vm231 = vmand %vm229, %vm230
      %v232 = vld [vmem:[#allocation2] sm:$0x1]
      %v233 = vsel %vm231, 0, %v232
      %234 = vst [vmem:[#allocation2] sm:$0x1] %v233
      %vm235 = vcmask 1043459
      %vm236 = vsmask.f32 7950
      %vm237 = vmand %vm235, %vm236
      %v238 = vld [vmem:[#allocation2 + $0x14] sm:$0x8]
      %v239 = vsel %vm237, 0, %v238
      %240 = vst [vmem:[#allocation2 + $0x14] sm:$0x8] %v239
      %v241 = vld [vmem:[#allocation2 + $0x18] sm:$0x1]
      %v242 = vsel %vm231, 0, %v241
      %243 = vst [vmem:[#allocation2 + $0x18] sm:$0x1] %v242
      %v244 = vld [vmem:[#allocation2 + $0x2c] sm:$0x8]
      %v245 = vsel %vm237, 0, %v244
      %246 = vst [vmem:[#allocation2 + $0x2c] sm:$0x8] %v245
      %v247 = vld [vmem:[#allocation2 + $0x30] sm:$0x1]
      %v248 = vsel %vm231, 0, %v247
      %249 = vst [vmem:[#allocation2 + $0x30] sm:$0x1] %v248
      %v250 = vld [vmem:[#allocation2 + $0x44] sm:$0x8]
      %v251 = vsel %vm237, 0, %v250
      %252 = vst [vmem:[#allocation2 + $0x44] sm:$0x8] %v251
      %v253 = vld [vmem:[#allocation2 + $0x48] sm:$0x1]
      %v254 = vsel %vm231, 0, %v253
      %255 = vst [vmem:[#allocation2 + $0x48] sm:$0x1] %v254
      %v256 = vld [vmem:[#allocation2 + $0x5c] sm:$0x8]
      %v257 = vsel %vm237, 0, %v256
      %258 = vst [vmem:[#allocation2 + $0x5c] sm:$0x8] %v257
      %v259 = vld [vmem:[#allocation2 + $0x60] sm:$0x1]
      %v260 = vsel %vm231, 0, %v259
      %261 = vst [vmem:[#allocation2 + $0x60] sm:$0x1] %v260
      %v262 = vld [vmem:[#allocation2 + $0x74] sm:$0x8]
      %v263 = vsel %vm237, 0, %v262
      %264 = vst [vmem:[#allocation2 + $0x74] sm:$0x8] %v263
      %v265 = vld [vmem:[#allocation2 + $0x78] sm:$0x1]
      %v266 = vsel %vm231, 0, %v265
      %267 = vst [vmem:[#allocation2 + $0x78] sm:$0x1] %v266
      %v268 = vld [vmem:[#allocation2 + $0x8c] sm:$0x8]
      %v269 = vsel %vm237, 0, %v268
      %270 = vst [vmem:[#allocation2 + $0x8c] sm:$0x8] %v269
      %v271 = vld [vmem:[#allocation2 + $0x90] sm:$0x1]
      %v272 = vsel %vm231, 0, %v271
      %273 = vst [vmem:[#allocation2 + $0x90] sm:$0x1] %v272
      %v274 = vld [vmem:[#allocation2 + $0xa4] sm:$0x8]
      %v275 = vsel %vm237, 0, %v274
      %276 = vst [vmem:[#allocation2 + $0xa4] sm:$0x8] %v275
      %v277 = vld [vmem:[#allocation2 + $0xa8] sm:$0x1]
      %v278 = vsel %vm231, 0, %v277
      %279 = vst [vmem:[#allocation2 + $0xa8] sm:$0x1] %v278
      %v280 = vld [vmem:[#allocation2 + $0xbc] sm:$0x8]
      %v281 = vsel %vm237, 0, %v280
      %282 = vst [vmem:[#allocation2 + $0xbc] sm:$0x8] %v281
      %v283 = vld [vmem:[%s220] sm:$0xff]
      %v284 = vld [vmem:[%s220 + $0x8] sm:$0xff]
      %v285 = vpack.c.bf16 %v283, %v283
      %v286 = vpack.c.bf16 %v284, %v284
      %vm287 = vsmask.f32 4368
      %vm288 = vmor %vm230, %vm287
      %v290 = vshrl.u32 %v285, 16
      %v292 = vrot.slane %v290, 7
      %v293 = vshll.u32 %v285, 16
      %v295 = vor.u32 %v292, %v293
      %v296 = vrot.slane %v292, 4
      %v298 = vshrl.u32 %v286, 16
      %v300 = vrot.slane %v298, 7
      %v301 = vshll.u32 %v286, 16
      %v303 = vor.u32 %v300, %v301
      %v304 = vsel %vm288, %v296, %v303
      %vm307 = vcmask 1043456
      %vm308 = vsmask.f32 7938
      %vm309 = vmand %vm307, %vm308
      %v310 = vld [vmem:[#allocation2] sm:$0xf]
      %v311 = vsel %vm309, %v295, %v310
      %312 = vst [vmem:[#allocation2] sm:$0xf] %v311
      %313 = vst [vmem:[#allocation2 + $0xc] sm:$0xf] %v304
      %314 = vst [vmem:[#allocation2 + $0x4] sm:$0xf] %v285
      %315 = vst [vmem:[#allocation2 + $0x10] sm:$0xf] %v286
      %vm316 = vsmask.f32 3328
      %vm317 = vsmask.f32 7440
      %vm318 = vmor %vm316, %vm317
      %v319 = vrot.slane %v290, 4
      %v320 = vrot.slane %v293, 5
      %v321 = vor.u32 %v319, %v320
      %v322 = vrot.slane %v321, 4
      %v323 = vrot.slane %v301, 5
      %v324 = vsel %vm318, %v322, %v323
      %v325 = vrot.slane %v298, 4
      %v326 = vor.u32 %v325, %v323
      %v327 = vrot.slane %v326, 4
      %330 = vst [vmem:[#allocation2 + $0x8] sm:$0xf] %v324
      %vm331 = vmand %vm307, %vm316
      %v332 = vld [vmem:[#allocation2 + $0x14] sm:$0xf]
      %v333 = vsel %vm331, %v327, %v332
      %334 = vst [vmem:[#allocation2 + $0x14] sm:$0xf] %v333
      %v335 = vld [vmem:[%s220 + $0x10] sm:$0xff]
      %v336 = vld [vmem:[%s220 + $0x18] sm:$0xff]
      %v337 = vpack.c.bf16 %v335, %v335
      %v338 = vpack.c.bf16 %v336, %v336
      %v340 = vshrl.u32 %v337, 16
      %v342 = vrot.slane %v340, 7
      %v343 = vshll.u32 %v337, 16
      %v345 = vor.u32 %v342, %v343
      %v346 = vrot.slane %v342, 4
      %v348 = vshrl.u32 %v338, 16
      %v350 = vrot.slane %v348, 7
      %v351 = vshll.u32 %v338, 16
      %v353 = vor.u32 %v350, %v351
      %v354 = vsel %vm288, %v346, %v353
      %v357 = vld [vmem:[#allocation2 + $0x18] sm:$0xf]
      %v358 = vsel %vm309, %v345, %v357
      %359 = vst [vmem:[#allocation2 + $0x18] sm:$0xf] %v358
      %360 = vst [vmem:[#allocation2 + $0x24] sm:$0xf] %v354
      %361 = vst [vmem:[#allocation2 + $0x1c] sm:$0xf] %v337
      %362 = vst [vmem:[#allocation2 + $0x28] sm:$0xf] %v338
      %v363 = vrot.slane %v340, 4
      %v364 = vrot.slane %v343, 5
      %v365 = vor.u32 %v363, %v364
      %v366 = vrot.slane %v365, 4
      %v367 = vrot.slane %v351, 5
      %v368 = vsel %vm318, %v366, %v367
      %v369 = vrot.slane %v348, 4
      %v370 = vor.u32 %v369, %v367
      %v371 = vrot.slane %v370, 4
      %374 = vst [vmem:[#allocation2 + $0x20] sm:$0xf] %v368
      %v375 = vld [vmem:[#allocation2 + $0x2c] sm:$0xf]
      %v376 = vsel %vm331, %v371, %v375
      %377 = vst [vmem:[#allocation2 + $0x2c] sm:$0xf] %v376
      %v378 = vld [vmem:[%s220 + $0x20] sm:$0xff]
      %v379 = vld [vmem:[%s220 + $0x28] sm:$0xff]
      %v380 = vpack.c.bf16 %v378, %v378
      %v381 = vpack.c.bf16 %v379, %v379
      %v383 = vshrl.u32 %v380, 16
      %v385 = vrot.slane %v383, 7
      %v386 = vshll.u32 %v380, 16
      %v388 = vor.u32 %v385, %v386
      %v389 = vrot.slane %v385, 4
      %v391 = vshrl.u32 %v381, 16
      %v393 = vrot.slane %v391, 7
      %v394 = vshll.u32 %v381, 16
      %v396 = vor.u32 %v393, %v394
      %v397 = vsel %vm288, %v389, %v396
      %v400 = vld [vmem:[#allocation2 + $0x30] sm:$0xf]
      %v401 = vsel %vm309, %v388, %v400
      %402 = vst [vmem:[#allocation2 + $0x30] sm:$0xf] %v401
      %403 = vst [vmem:[#allocation2 + $0x3c] sm:$0xf] %v397
      %404 = vst [vmem:[#allocation2 + $0x34] sm:$0xf] %v380
      %405 = vst [vmem:[#allocation2 + $0x40] sm:$0xf] %v381
      %v406 = vrot.slane %v383, 4
      %v407 = vrot.slane %v386, 5
      %v408 = vor.u32 %v406, %v407
      %v409 = vrot.slane %v408, 4
      %v410 = vrot.slane %v394, 5
      %v411 = vsel %vm318, %v409, %v410
      %v412 = vrot.slane %v391, 4
      %v413 = vor.u32 %v412, %v410
      %v414 = vrot.slane %v413, 4
      %417 = vst [vmem:[#allocation2 + $0x38] sm:$0xf] %v411
      %v418 = vld [vmem:[#allocation2 + $0x44] sm:$0xf]
      %v419 = vsel %vm331, %v414, %v418
      %420 = vst [vmem:[#allocation2 + $0x44] sm:$0xf] %v419
      %v421 = vld [vmem:[%s220 + $0x30] sm:$0xff]
      %v422 = vld [vmem:[%s220 + $0x38] sm:$0xff]
      %v423 = vpack.c.bf16 %v421, %v421
      %v424 = vpack.c.bf16 %v422, %v422
      %v426 = vshrl.u32 %v423, 16
      %v428 = vrot.slane %v426, 7
      %v429 = vshll.u32 %v423, 16
      %v431 = vor.u32 %v428, %v429
      %v432 = vrot.slane %v428, 4
      %v434 = vshrl.u32 %v424, 16
      %v436 = vrot.slane %v434, 7
      %v437 = vshll.u32 %v424, 16
      %v439 = vor.u32 %v436, %v437
      %v440 = vsel %vm288, %v432, %v439
      %v443 = vld [vmem:[#allocation2 + $0x48] sm:$0xf]
      %v444 = vsel %vm309, %v431, %v443
      %445 = vst [vmem:[#allocation2 + $0x48] sm:$0xf] %v444
      %446 = vst [vmem:[#allocation2 + $0x54] sm:$0xf] %v440
      %447 = vst [vmem:[#allocation2 + $0x4c] sm:$0xf] %v423
      %448 = vst [vmem:[#allocation2 + $0x58] sm:$0xf] %v424
      %v449 = vrot.slane %v426, 4
      %v450 = vrot.slane %v429, 5
      %v451 = vor.u32 %v449, %v450
      %v452 = vrot.slane %v451, 4
      %v453 = vrot.slane %v437, 5
      %v454 = vsel %vm318, %v452, %v453
      %v455 = vrot.slane %v434, 4
      %v456 = vor.u32 %v455, %v453
      %v457 = vrot.slane %v456, 4
      %460 = vst [vmem:[#allocation2 + $0x50] sm:$0xf] %v454
      %v461 = vld [vmem:[#allocation2 + $0x5c] sm:$0xf]
      %v462 = vsel %vm331, %v457, %v461
      %463 = vst [vmem:[#allocation2 + $0x5c] sm:$0xf] %v462
      %v464 = vld [vmem:[%s220 + $0x40] sm:$0xff]
      %v465 = vld [vmem:[%s220 + $0x48] sm:$0xff]
      %v466 = vpack.c.bf16 %v464, %v464
      %v467 = vpack.c.bf16 %v465, %v465
      %v469 = vshrl.u32 %v466, 16
      %v471 = vrot.slane %v469, 7
      %v472 = vshll.u32 %v466, 16
      %v474 = vor.u32 %v471, %v472
      %v475 = vrot.slane %v471, 4
      %v477 = vshrl.u32 %v467, 16
      %v479 = vrot.slane %v477, 7
      %v480 = vshll.u32 %v467, 16
      %v482 = vor.u32 %v479, %v480
      %v483 = vsel %vm288, %v475, %v482
      %v486 = vld [vmem:[#allocation2 + $0x60] sm:$0xf]
      %v487 = vsel %vm309, %v474, %v486
      %488 = vst [vmem:[#allocation2 + $0x60] sm:$0xf] %v487
      %489 = vst [vmem:[#allocation2 + $0x6c] sm:$0xf] %v483
      %490 = vst [vmem:[#allocation2 + $0x64] sm:$0xf] %v466
      %491 = vst [vmem:[#allocation2 + $0x70] sm:$0xf] %v467
      %v492 = vrot.slane %v469, 4
      %v493 = vrot.slane %v472, 5
      %v494 = vor.u32 %v492, %v493
      %v495 = vrot.slane %v494, 4
      %v496 = vrot.slane %v480, 5
      %v497 = vsel %vm318, %v495, %v496
      %v498 = vrot.slane %v477, 4
      %v499 = vor.u32 %v498, %v496
      %v500 = vrot.slane %v499, 4
      %503 = vst [vmem:[#allocation2 + $0x68] sm:$0xf] %v497
      %v504 = vld [vmem:[#allocation2 + $0x74] sm:$0xf]
      %v505 = vsel %vm331, %v500, %v504
      %506 = vst [vmem:[#allocation2 + $0x74] sm:$0xf] %v505
      %v507 = vld [vmem:[%s220 + $0x50] sm:$0xff]
      %v508 = vld [vmem:[%s220 + $0x58] sm:$0xff]
      %v509 = vpack.c.bf16 %v507, %v507
      %v510 = vpack.c.bf16 %v508, %v508
      %v512 = vshrl.u32 %v509, 16
      %v514 = vrot.slane %v512, 7
      %v515 = vshll.u32 %v509, 16
      %v517 = vor.u32 %v514, %v515
      %v518 = vrot.slane %v514, 4
      %v520 = vshrl.u32 %v510, 16
      %v522 = vrot.slane %v520, 7
      %v523 = vshll.u32 %v510, 16
      %v525 = vor.u32 %v522, %v523
      %v526 = vsel %vm288, %v518, %v525
      %v529 = vld [vmem:[#allocation2 + $0x78] sm:$0xf]
      %v530 = vsel %vm309, %v517, %v529
      %531 = vst [vmem:[#allocation2 + $0x78] sm:$0xf] %v530
      %532 = vst [vmem:[#allocation2 + $0x84] sm:$0xf] %v526
      %533 = vst [vmem:[#allocation2 + $0x7c] sm:$0xf] %v509
      %534 = vst [vmem:[#allocation2 + $0x88] sm:$0xf] %v510
      %v535 = vrot.slane %v512, 4
      %v536 = vrot.slane %v515, 5
      %v537 = vor.u32 %v535, %v536
      %v538 = vrot.slane %v537, 4
      %v539 = vrot.slane %v523, 5
      %v540 = vsel %vm318, %v538, %v539
      %v541 = vrot.slane %v520, 4
      %v542 = vor.u32 %v541, %v539
      %v543 = vrot.slane %v542, 4
      %546 = vst [vmem:[#allocation2 + $0x80] sm:$0xf] %v540
      %v547 = vld [vmem:[#allocation2 + $0x8c] sm:$0xf]
      %v548 = vsel %vm331, %v543, %v547
      %549 = vst [vmem:[#allocation2 + $0x8c] sm:$0xf] %v548
      %v550 = vld [vmem:[%s220 + $0x60] sm:$0xff]
      %v551 = vld [vmem:[%s220 + $0x68] sm:$0xff]
      %v552 = vpack.c.bf16 %v550, %v550
      %v553 = vpack.c.bf16 %v551, %v551
      %v555 = vshrl.u32 %v552, 16
      %v557 = vrot.slane %v555, 7
      %v558 = vshll.u32 %v552, 16
      %v560 = vor.u32 %v557, %v558
      %v561 = vrot.slane %v557, 4
      %v563 = vshrl.u32 %v553, 16
      %v565 = vrot.slane %v563, 7
      %v566 = vshll.u32 %v553, 16
      %v568 = vor.u32 %v565, %v566
      %v569 = vsel %vm288, %v561, %v568
      %v572 = vld [vmem:[#allocation2 + $0x90] sm:$0xf]
      %v573 = vsel %vm309, %v560, %v572
      %574 = vst [vmem:[#allocation2 + $0x90] sm:$0xf] %v573
      %575 = vst [vmem:[#allocation2 + $0x9c] sm:$0xf] %v569
      %576 = vst [vmem:[#allocation2 + $0x94] sm:$0xf] %v552
      %577 = vst [vmem:[#allocation2 + $0xa0] sm:$0xf] %v553
      %v578 = vrot.slane %v555, 4
      %v579 = vrot.slane %v558, 5
      %v580 = vor.u32 %v578, %v579
      %v581 = vrot.slane %v580, 4
      %v582 = vrot.slane %v566, 5
      %v583 = vsel %vm318, %v581, %v582
      %v584 = vrot.slane %v563, 4
      %v585 = vor.u32 %v584, %v582
      %v586 = vrot.slane %v585, 4
      %589 = vst [vmem:[#allocation2 + $0x98] sm:$0xf] %v583
      %v590 = vld [vmem:[#allocation2 + $0xa4] sm:$0xf]
      %v591 = vsel %vm331, %v586, %v590
      %592 = vst [vmem:[#allocation2 + $0xa4] sm:$0xf] %v591
      %v593 = vld [vmem:[%s220 + $0x70] sm:$0xff]
      %v594 = vld [vmem:[%s220 + $0x78] sm:$0xff]
      %v595 = vpack.c.bf16 %v593, %v593
      %v596 = vpack.c.bf16 %v594, %v594
      %v598 = vshrl.u32 %v595, 16
      %v600 = vrot.slane %v598, 7
      %v601 = vshll.u32 %v595, 16
      %v603 = vor.u32 %v600, %v601
      %v604 = vrot.slane %v600, 4
      %v606 = vshrl.u32 %v596, 16
      %v608 = vrot.slane %v606, 7
      %v609 = vshll.u32 %v596, 16
      %v611 = vor.u32 %v608, %v609
      %v612 = vsel %vm288, %v604, %v611
      %v615 = vld [vmem:[#allocation2 + $0xa8] sm:$0xf]
      %v616 = vsel %vm309, %v603, %v615
      %617 = vst [vmem:[#allocation2 + $0xa8] sm:$0xf] %v616
      %618 = vst [vmem:[#allocation2 + $0xb4] sm:$0xf] %v612
      %619 = vst [vmem:[#allocation2 + $0xac] sm:$0xf] %v595
      %620 = vst [vmem:[#allocation2 + $0xb8] sm:$0xf] %v596
      %v621 = vrot.slane %v598, 4
      %v622 = vrot.slane %v601, 5
      %v623 = vor.u32 %v621, %v622
      %v624 = vrot.slane %v623, 4
      %v625 = vrot.slane %v609, 5
      %v626 = vsel %vm318, %v624, %v625
      %v627 = vrot.slane %v606, 4
      %v628 = vor.u32 %v627, %v625
      %v629 = vrot.slane %v628, 4
      %632 = vst [vmem:[#allocation2 + $0xb0] sm:$0xf] %v626
      %v633 = vld [vmem:[#allocation2 + $0xbc] sm:$0xf]
      %v634 = vsel %vm331, %v629, %v633
      %635 = vst [vmem:[#allocation2 + $0xbc] sm:$0xf] %v634
      %v636 = vld [vmem:[#allocation2] sm:$0xff]
      %v637 = vld [vmem:[#allocation2 + $0x8] sm:$0xf]
      %v638 = vld [vmem:[#allocation2 + $0xc] sm:$0xff]
      %v639 = vld [vmem:[#allocation2 + $0x14] sm:$0xf]
      %v640 = vld [vmem:[#allocation2 + $0x18] sm:$0xff]
      %v641 = vld [vmem:[#allocation2 + $0x20] sm:$0xf]
      %v642 = vld [vmem:[#allocation2 + $0x24] sm:$0xff]
      %v643 = vld [vmem:[#allocation2 + $0x2c] sm:$0xf]
      %v644 = vld [vmem:[#allocation2 + $0x30] sm:$0xff]
      %v645 = vld [vmem:[#allocation2 + $0x38] sm:$0xf]
      %v646 = vld [vmem:[#allocation2 + $0x3c] sm:$0xff]
      %v647 = vld [vmem:[#allocation2 + $0x44] sm:$0xf]
      %v648 = vld [vmem:[#allocation2 + $0x48] sm:$0xff]
      %v649 = vld [vmem:[#allocation2 + $0x50] sm:$0xf]
      %v650 = vld [vmem:[#allocation2 + $0x54] sm:$0xff]
      %v651 = vld [vmem:[#allocation2 + $0x5c] sm:$0xf]
      %v652 = vld [vmem:[#allocation2 + $0x60] sm:$0xff]
      %v653 = vld [vmem:[#allocation2 + $0x68] sm:$0xf]
      %v654 = vld [vmem:[#allocation2 + $0x6c] sm:$0xff]
      %v655 = vld [vmem:[#allocation2 + $0x74] sm:$0xf]
      %v656 = vld [vmem:[#allocation2 + $0x78] sm:$0xff]
      %v657 = vld [vmem:[#allocation2 + $0x80] sm:$0xf]
      %v658 = vld [vmem:[#allocation2 + $0x84] sm:$0xff]
      %v659 = vld [vmem:[#allocation2 + $0x8c] sm:$0xf]
      %v660 = vld [vmem:[#allocation2 + $0x90] sm:$0xff]
      %v661 = vld [vmem:[#allocation2 + $0x98] sm:$0xf]
      %v662 = vld [vmem:[#allocation2 + $0x9c] sm:$0xff]
      %v663 = vld [vmem:[#allocation2 + $0xa4] sm:$0xf]
      %v664 = vld [vmem:[#allocation2 + $0xa8] sm:$0xff]
      %v665 = vld [vmem:[#allocation2 + $0xb0] sm:$0xf]
      %v666 = vld [vmem:[#allocation2 + $0xb4] sm:$0xff]
      %v667 = vld [vmem:[#allocation2 + $0xbc] sm:$0xf]
      %v668 = vld [vmem:[%s1] sm:$0xf]
      %v669 = vld [vmem:[%s1 + $0x4] sm:$0xf]
      %v670 = vld [vmem:[%s1 + $0x8] sm:$0xf]
      %v671 = vld [vmem:[%s1 + $0xc] sm:$0xf]
      %v672 = vld [vmem:[%s1 + $0x10] sm:$0xf]
      %v673 = vld [vmem:[%s1 + $0x14] sm:$0xf]
      %v674 = vld [vmem:[%s1 + $0x18] sm:$0xf]
      %v675 = vld [vmem:[%s1 + $0x1c] sm:$0xf]
      %v676 = vld [vmem:[%s1 + $0x20] sm:$0xf]
      %v677 = vld [vmem:[%s1 + $0x24] sm:$0xf]
      %v678 = vld [vmem:[%s1 + $0x28] sm:$0xf]
      %v679 = vld [vmem:[%s1 + $0x2c] sm:$0xf]
      %v680 = vld [vmem:[%s1 + $0x30] sm:$0xf]
      %v681 = vld [vmem:[%s1 + $0x34] sm:$0xf]
      %v682 = vld [vmem:[%s1 + $0x38] sm:$0xf]
      %v683 = vld [vmem:[%s1 + $0x3c] sm:$0xf]
      %v684 = vld [vmem:[%s1 + $0x40] sm:$0xf]
      %v685 = vld [vmem:[%s1 + $0x44] sm:$0xf]
      %v686 = vld [vmem:[%s1 + $0x48] sm:$0xf]
      %v687 = vld [vmem:[%s1 + $0x4c] sm:$0xf]
      %v688 = vld [vmem:[%s1 + $0x50] sm:$0xf]
      %v689 = vld [vmem:[%s1 + $0x54] sm:$0xf]
      %v690 = vld [vmem:[%s1 + $0x58] sm:$0xf]
      %v691 = vld [vmem:[%s1 + $0x5c] sm:$0xf]
      %v692 = vld [vmem:[%s1 + $0x60] sm:$0xf]
      %v693 = vld [vmem:[%s1 + $0x64] sm:$0xf]
      %v694 = vld [vmem:[%s1 + $0x68] sm:$0xf]
      %v695 = vld [vmem:[%s1 + $0x6c] sm:$0xf]
      %v696 = vld [vmem:[%s1 + $0x70] sm:$0xf]
      %v697 = vld [vmem:[%s1 + $0x74] sm:$0xf]
      %v698 = vld [vmem:[%s1 + $0x78] sm:$0xf]
      %v699 = vld [vmem:[%s1 + $0x7c] sm:$0xf]
      %v700 = vld [vmem:[%s1 + $0x80] sm:$0xf]
      %v701 = vld [vmem:[%s1 + $0x84] sm:$0xf]
      %v702 = vld [vmem:[%s1 + $0x88] sm:$0xf]
      %v703 = vld [vmem:[%s1 + $0x8c] sm:$0xf]
      %v704 = vld [vmem:[%s1 + $0x90] sm:$0xf]
      %v705 = vld [vmem:[%s1 + $0x94] sm:$0xf]
      %v706 = vld [vmem:[%s1 + $0x98] sm:$0xf]
      %v707 = vld [vmem:[%s1 + $0x9c] sm:$0xf]
      %v708 = vld [vmem:[%s1 + $0xa0] sm:$0xf]
      %v709 = vld [vmem:[%s1 + $0xa4] sm:$0xf]
      %v710 = vld [vmem:[%s1 + $0xa8] sm:$0xf]
      %v711 = vld [vmem:[%s1 + $0xac] sm:$0xf]
      %v712 = vld [vmem:[%s1 + $0xb0] sm:$0xf]
      %v713 = vld [vmem:[%s1 + $0xb4] sm:$0xf]
      %v714 = vld [vmem:[%s1 + $0xb8] sm:$0xf]
      %v715 = vld [vmem:[%s1 + $0xbc] sm:$0xf]
      %v716 = vld [vmem:[%s2] sm:$0x1]
      %v718 = vperm.slane %v716, 0
      %v752 = vunpack.c.l.b16 %v636
      %v753 = vunpack.c.h.b16 %v636
      %v754 = vunpack.c.l.b16 %v637
      %v755 = vunpack.c.l.b16 %v638
      %v756 = vunpack.c.h.b16 %v638
      %v757 = vunpack.c.l.b16 %v639
      %v758 = vunpack.c.l.b16 %v640
      %v759 = vunpack.c.h.b16 %v640
      %v760 = vunpack.c.l.b16 %v641
      %v761 = vunpack.c.l.b16 %v642
      %v762 = vunpack.c.h.b16 %v642
      %v763 = vunpack.c.l.b16 %v643
      %v764 = vunpack.c.l.b16 %v644
      %v765 = vunpack.c.h.b16 %v644
      %v766 = vunpack.c.l.b16 %v645
      %v767 = vunpack.c.l.b16 %v646
      %v768 = vunpack.c.h.b16 %v646
      %v769 = vunpack.c.l.b16 %v647
      %v770 = vunpack.c.l.b16 %v648
      %v771 = vunpack.c.h.b16 %v648
      %v772 = vunpack.c.l.b16 %v649
      %v773 = vunpack.c.l.b16 %v650
      %v774 = vunpack.c.h.b16 %v650
      %v775 = vunpack.c.l.b16 %v651
      %v776 = vunpack.c.l.b16 %v652
      %v777 = vunpack.c.h.b16 %v652
      %v778 = vunpack.c.l.b16 %v653
      %v779 = vunpack.c.l.b16 %v654
      %v780 = vunpack.c.h.b16 %v654
      %v781 = vunpack.c.l.b16 %v655
      %v782 = vunpack.c.l.b16 %v656
      %v783 = vunpack.c.h.b16 %v656
      %v784 = vunpack.c.l.b16 %v657
      %v785 = vunpack.c.l.b16 %v658
      %v786 = vunpack.c.h.b16 %v658
      %v787 = vunpack.c.l.b16 %v659
      %v788 = vunpack.c.l.b16 %v660
      %v789 = vunpack.c.h.b16 %v660
      %v790 = vunpack.c.l.b16 %v661
      %v791 = vunpack.c.l.b16 %v662
      %v792 = vunpack.c.h.b16 %v662
      %v793 = vunpack.c.l.b16 %v663
      %v794 = vunpack.c.l.b16 %v664
      %v795 = vunpack.c.h.b16 %v664
      %v796 = vunpack.c.l.b16 %v665
      %v797 = vunpack.c.l.b16 %v666
      %v798 = vunpack.c.h.b16 %v666
      %v799 = vunpack.c.l.b16 %v667
      %v800 = vpack.c.b16 %v755, %v752
      %v801 = vpack.c.b16 %v756, %v753
      %v802 = vpack.c.b16 %v757, %v754
      %v803 = vpack.c.b16 %v761, %v758
      %v804 = vpack.c.b16 %v762, %v759
      %v805 = vpack.c.b16 %v763, %v760
      %v806 = vpack.c.b16 %v767, %v764
      %v807 = vpack.c.b16 %v768, %v765
      %v808 = vpack.c.b16 %v769, %v766
      %v809 = vpack.c.b16 %v773, %v770
      %v810 = vpack.c.b16 %v774, %v771
      %v811 = vpack.c.b16 %v775, %v772
      %v812 = vpack.c.b16 %v779, %v776
      %v813 = vpack.c.b16 %v780, %v777
      %v814 = vpack.c.b16 %v781, %v778
      %v815 = vpack.c.b16 %v785, %v782
      %v816 = vpack.c.b16 %v786, %v783
      %v817 = vpack.c.b16 %v787, %v784
      %v818 = vpack.c.b16 %v791, %v788
      %v819 = vpack.c.b16 %v792, %v789
      %v820 = vpack.c.b16 %v793, %v790
      %v821 = vpack.c.b16 %v797, %v794
      %v822 = vpack.c.b16 %v798, %v795
      %v823 = vpack.c.b16 %v799, %v796
      %v896 = vunpack.c.l.b16 %v668
      %v897 = vunpack.c.l.b16 %v669
      %v898 = vunpack.c.l.b16 %v670
      %v899 = vunpack.c.l.b16 %v671
      %v900 = vunpack.c.l.b16 %v672
      %v901 = vunpack.c.l.b16 %v673
      %v902 = vunpack.c.l.b16 %v674
      %v903 = vunpack.c.l.b16 %v675
      %v904 = vunpack.c.l.b16 %v676
      %v905 = vunpack.c.l.b16 %v677
      %v906 = vunpack.c.l.b16 %v678
      %v907 = vunpack.c.l.b16 %v679
      %v908 = vunpack.c.l.b16 %v680
      %v909 = vunpack.c.l.b16 %v681
      %v910 = vunpack.c.l.b16 %v682
      %v911 = vunpack.c.l.b16 %v683
      %v912 = vunpack.c.l.b16 %v684
      %v913 = vunpack.c.l.b16 %v685
      %v914 = vunpack.c.l.b16 %v686
      %v915 = vunpack.c.l.b16 %v687
      %v916 = vunpack.c.l.b16 %v688
      %v917 = vunpack.c.l.b16 %v689
      %v918 = vunpack.c.l.b16 %v690
      %v919 = vunpack.c.l.b16 %v691
      %v920 = vunpack.c.l.b16 %v692
      %v921 = vunpack.c.l.b16 %v693
      %v922 = vunpack.c.l.b16 %v694
      %v923 = vunpack.c.l.b16 %v695
      %v924 = vunpack.c.l.b16 %v696
      %v925 = vunpack.c.l.b16 %v697
      %v926 = vunpack.c.l.b16 %v698
      %v927 = vunpack.c.l.b16 %v699
      %v928 = vunpack.c.l.b16 %v700
      %v929 = vunpack.c.l.b16 %v701
      %v930 = vunpack.c.l.b16 %v702
      %v931 = vunpack.c.l.b16 %v703
      %v932 = vunpack.c.l.b16 %v704
      %v933 = vunpack.c.l.b16 %v705
      %v934 = vunpack.c.l.b16 %v706
      %v935 = vunpack.c.l.b16 %v707
      %v936 = vunpack.c.l.b16 %v708
      %v937 = vunpack.c.l.b16 %v709
      %v938 = vunpack.c.l.b16 %v710
      %v939 = vunpack.c.l.b16 %v711
      %v940 = vunpack.c.l.b16 %v712
      %v941 = vunpack.c.l.b16 %v713
      %v942 = vunpack.c.l.b16 %v714
      %v943 = vunpack.c.l.b16 %v715
      %v944 = vpack.c.b16 %v897, %v896
      %v945 = vpack.c.b16 %v899, %v898
      %v946 = vpack.c.b16 %v901, %v900
      %v947 = vpack.c.b16 %v903, %v902
      %v948 = vpack.c.b16 %v905, %v904
      %v949 = vpack.c.b16 %v907, %v906
      %v950 = vpack.c.b16 %v909, %v908
      %v951 = vpack.c.b16 %v911, %v910
      %v952 = vpack.c.b16 %v913, %v912
      %v953 = vpack.c.b16 %v915, %v914
      %v954 = vpack.c.b16 %v917, %v916
      %v955 = vpack.c.b16 %v919, %v918
      %v956 = vpack.c.b16 %v921, %v920
      %v957 = vpack.c.b16 %v923, %v922
      %v958 = vpack.c.b16 %v925, %v924
      %v959 = vpack.c.b16 %v927, %v926
      %v960 = vpack.c.b16 %v929, %v928
      %v961 = vpack.c.b16 %v931, %v930
      %v962 = vpack.c.b16 %v933, %v932
      %v963 = vpack.c.b16 %v935, %v934
      %v964 = vpack.c.b16 %v937, %v936
      %v965 = vpack.c.b16 %v939, %v938
      %v966 = vpack.c.b16 %v941, %v940
      %v967 = vpack.c.b16 %v943, %v942
      %992 = vmatpush.bf16.msra.mxu0 %v951
      %993 = vmatpush.bf16.msra.mxu0 %v950
      %994 = vmatpush.bf16.msra.mxu0 %v949
      %995 = vmatpush.bf16.msra.mxu0 %v948
      %996 = vmatpush.bf16.msra.mxu0 %v947
      %997 = vmatpush.bf16.msra.mxu0 %v946
      %998 = vmatpush.bf16.msra.mxu0 %v945
      %999 = vmatpush.bf16.msra.mxu0 %v944
      %1000 = vmatmul.bf16.gmra.mxu0 %v800
      %v1001 = vpop.f32.mrf.mxu0
      %v1002 = vadd.f32 %v718, %v1001
      %v1003 = vpop.f32.mrf.mxu0
      %v1004 = vadd.f32 %v718, %v1003
      %1005 = vmatmul.bf16.gmra.mxu0 %v803
      %v1006 = vpop.f32.mrf.mxu0
      %v1007 = vadd.f32 %v718, %v1006
      %v1008 = vpop.f32.mrf.mxu0
      %v1009 = vadd.f32 %v718, %v1008
      %1010 = vmatmul.bf16.gmra.mxu0 %v806
      %v1011 = vpop.f32.mrf.mxu0
      %v1012 = vadd.f32 %v718, %v1011
      %v1013 = vpop.f32.mrf.mxu0
      %v1014 = vadd.f32 %v718, %v1013
      %1015 = vmatmul.bf16.gmra.mxu0 %v809
      %v1016 = vpop.f32.mrf.mxu0
      %v1017 = vadd.f32 %v718, %v1016
      %v1018 = vpop.f32.mrf.mxu0
      %v1019 = vadd.f32 %v718, %v1018
      %1020 = vmatmul.bf16.gmra.mxu0 %v812
      %v1021 = vpop.f32.mrf.mxu0
      %v1022 = vadd.f32 %v718, %v1021
      %v1023 = vpop.f32.mrf.mxu0
      %v1024 = vadd.f32 %v718, %v1023
      %1025 = vmatmul.bf16.gmra.mxu0 %v815
      %v1026 = vpop.f32.mrf.mxu0
      %v1027 = vadd.f32 %v718, %v1026
      %v1028 = vpop.f32.mrf.mxu0
      %v1029 = vadd.f32 %v718, %v1028
      %1030 = vmatmul.bf16.gmra.mxu0 %v818
      %v1031 = vpop.f32.mrf.mxu0
      %v1032 = vadd.f32 %v718, %v1031
      %v1033 = vpop.f32.mrf.mxu0
      %v1034 = vadd.f32 %v718, %v1033
      %1035 = vmatmul.bf16.gmra.mxu0 %v821
      %v1036 = vpop.f32.mrf.mxu0
      %v1037 = vadd.f32 %v718, %v1036
      %v1038 = vpop.f32.mrf.mxu0
      %v1039 = vadd.f32 %v718, %v1038
      %1040 = vdwg.mxu0
      %1041 = vmatpush.bf16.msra.mxu0 %v959
      %1042 = vmatpush.bf16.msra.mxu0 %v958
      %1043 = vmatpush.bf16.msra.mxu0 %v957
      %1044 = vmatpush.bf16.msra.mxu0 %v956
      %1045 = vmatpush.bf16.msra.mxu0 %v955
      %1046 = vmatpush.bf16.msra.mxu0 %v954
      %1047 = vmatpush.bf16.msra.mxu0 %v953
      %1048 = vmatpush.bf16.msra.mxu0 %v952
      %1049 = vmatmul.bf16.gmra.mxu0 %v801
      %v1050 = vpop.f32.mrf.mxu0
      %v1051 = vadd.f32 %v1002, %v1050
      %v1052 = vpop.f32.mrf.mxu0
      %v1053 = vadd.f32 %v1004, %v1052
      %1054 = vmatmul.bf16.gmra.mxu0 %v804
      %v1055 = vpop.f32.mrf.mxu0
      %v1056 = vadd.f32 %v1007, %v1055
      %v1057 = vpop.f32.mrf.mxu0
      %v1058 = vadd.f32 %v1009, %v1057
      %1059 = vmatmul.bf16.gmra.mxu0 %v807
      %v1060 = vpop.f32.mrf.mxu0
      %v1061 = vadd.f32 %v1012, %v1060
      %v1062 = vpop.f32.mrf.mxu0
      %v1063 = vadd.f32 %v1014, %v1062
      %1064 = vmatmul.bf16.gmra.mxu0 %v810
      %v1065 = vpop.f32.mrf.mxu0
      %v1066 = vadd.f32 %v1017, %v1065
      %v1067 = vpop.f32.mrf.mxu0
      %v1068 = vadd.f32 %v1019, %v1067
      %1069 = vmatmul.bf16.gmra.mxu0 %v813
      %v1070 = vpop.f32.mrf.mxu0
      %v1071 = vadd.f32 %v1022, %v1070
      %v1072 = vpop.f32.mrf.mxu0
      %v1073 = vadd.f32 %v1024, %v1072
      %1074 = vmatmul.bf16.gmra.mxu0 %v816
      %v1075 = vpop.f32.mrf.mxu0
      %v1076 = vadd.f32 %v1027, %v1075
      %v1077 = vpop.f32.mrf.mxu0
      %v1078 = vadd.f32 %v1029, %v1077
      %1079 = vmatmul.bf16.gmra.mxu0 %v819
      %v1080 = vpop.f32.mrf.mxu0
      %v1081 = vadd.f32 %v1032, %v1080
      %v1082 = vpop.f32.mrf.mxu0
      %v1083 = vadd.f32 %v1034, %v1082
      %1084 = vmatmul.bf16.gmra.mxu0 %v822
      %v1085 = vpop.f32.mrf.mxu0
      %v1086 = vadd.f32 %v1037, %v1085
      %v1087 = vpop.f32.mrf.mxu0
      %v1088 = vadd.f32 %v1039, %v1087
      %1089 = vdwg.mxu0
      %1090 = vmatpush.bf16.msra.mxu0 %v967
      %1091 = vmatpush.bf16.msra.mxu0 %v966
      %1092 = vmatpush.bf16.msra.mxu0 %v965
      %1093 = vmatpush.bf16.msra.mxu0 %v964
      %1094 = vmatpush.bf16.msra.mxu0 %v963
      %1095 = vmatpush.bf16.msra.mxu0 %v962
      %1096 = vmatpush.bf16.msra.mxu0 %v961
      %1097 = vmatpush.bf16.msra.mxu0 %v960
      %1098 = vmatmul.bf16.gmra.mxu0 %v802
      %v1099 = vpop.f32.mrf.mxu0
      %v1100 = vadd.f32 %v1051, %v1099
      %v1101 = vpop.f32.mrf.mxu0
      %v1102 = vadd.f32 %v1053, %v1101
      %1103 = vmatmul.bf16.gmra.mxu0 %v805
      %v1104 = vpop.f32.mrf.mxu0
      %v1105 = vadd.f32 %v1056, %v1104
      %v1106 = vpop.f32.mrf.mxu0
      %v1107 = vadd.f32 %v1058, %v1106
      %1108 = vmatmul.bf16.gmra.mxu0 %v808
      %v1109 = vpop.f32.mrf.mxu0
      %v1110 = vadd.f32 %v1061, %v1109
      %v1111 = vpop.f32.mrf.mxu0
      %v1112 = vadd.f32 %v1063, %v1111
      %1113 = vmatmul.bf16.gmra.mxu0 %v811
      %v1114 = vpop.f32.mrf.mxu0
      %v1115 = vadd.f32 %v1066, %v1114
      %v1116 = vpop.f32.mrf.mxu0
      %v1117 = vadd.f32 %v1068, %v1116
      %1118 = vmatmul.bf16.gmra.mxu0 %v814
      %v1119 = vpop.f32.mrf.mxu0
      %v1120 = vadd.f32 %v1071, %v1119
      %v1121 = vpop.f32.mrf.mxu0
      %v1122 = vadd.f32 %v1073, %v1121
      %1123 = vmatmul.bf16.gmra.mxu0 %v817
      %v1124 = vpop.f32.mrf.mxu0
      %v1125 = vadd.f32 %v1076, %v1124
      %v1126 = vpop.f32.mrf.mxu0
      %v1127 = vadd.f32 %v1078, %v1126
      %1128 = vmatmul.bf16.gmra.mxu0 %v820
      %v1129 = vpop.f32.mrf.mxu0
      %v1130 = vadd.f32 %v1081, %v1129
      %v1131 = vpop.f32.mrf.mxu0
      %v1132 = vadd.f32 %v1083, %v1131
      %1133 = vmatmul.bf16.gmra.mxu0 %v823
      %v1134 = vpop.f32.mrf.mxu0
      %v1135 = vadd.f32 %v1086, %v1134
      %v1136 = vpop.f32.mrf.mxu0
      %v1137 = vadd.f32 %v1088, %v1136
      %1138 = vdwg.mxu0
      %v1139 = vmax.f32 %v1100, 0.0
      %v1140 = vmax.f32 %v1102, 0.0
      %v1141 = vmax.f32 %v1105, 0.0
      %v1142 = vmax.f32 %v1107, 0.0
      %v1143 = vmax.f32 %v1110, 0.0
      %v1144 = vmax.f32 %v1112, 0.0
      %v1145 = vmax.f32 %v1115, 0.0
      %v1146 = vmax.f32 %v1117, 0.0
      %v1147 = vmax.f32 %v1120, 0.0
      %v1148 = vmax.f32 %v1122, 0.0
      %v1149 = vmax.f32 %v1125, 0.0
      %v1150 = vmax.f32 %v1127, 0.0
      %v1151 = vmax.f32 %v1130, 0.0
      %v1152 = vmax.f32 %v1132, 0.0
      %v1153 = vmax.f32 %v1135, 0.0
      %v1154 = vmax.f32 %v1137, 0.0
      %v1155 = vpack.c.bf16 %v1139, %v1139
      %v1156 = vpack.c.bf16 %v1140, %v1140
      %v1157 = vpack.c.bf16 %v1141, %v1141
      %v1158 = vpack.c.bf16 %v1142, %v1142
      %v1159 = vpack.c.bf16 %v1143, %v1143
      %v1160 = vpack.c.bf16 %v1144, %v1144
      %v1161 = vpack.c.bf16 %v1145, %v1145
      %v1162 = vpack.c.bf16 %v1146, %v1146
      %v1163 = vpack.c.bf16 %v1147, %v1147
      %v1164 = vpack.c.bf16 %v1148, %v1148
      %v1165 = vpack.c.bf16 %v1149, %v1149
      %v1166 = vpack.c.bf16 %v1150, %v1150
      %v1167 = vpack.c.bf16 %v1151, %v1151
      %v1168 = vpack.c.bf16 %v1152, %v1152
      %v1169 = vpack.c.bf16 %v1153, %v1153
      %v1170 = vpack.c.bf16 %v1154, %v1154
      %v1172 = vshrl.u32 %v1155, 16
      %v1174 = vrot.slane %v1172, 7
      %v1175 = vshll.u32 %v1155, 16
      %v1177 = vor.u32 %v1174, %v1175
      %v1178 = vrot.slane %v1174, 4
      %v1180 = vshrl.u32 %v1156, 16
      %v1182 = vrot.slane %v1180, 7
      %v1183 = vshll.u32 %v1156, 16
      %v1185 = vor.u32 %v1182, %v1183
      %v1186 = vsel %vm288, %v1178, %v1185
      %v1189 = vld [vmem:[#allocation2] sm:$0xf]
      %v1190 = vsel %vm309, %v1177, %v1189
      %1191 = vst [vmem:[#allocation2] sm:$0xf] %v1190
      %1192 = vst [vmem:[#allocation2 + $0xc] sm:$0xf] %v1186
      %1193 = vst [vmem:[#allocation2 + $0x4] sm:$0xf] %v1155
      %1194 = vst [vmem:[#allocation2 + $0x10] sm:$0xf] %v1156
      %v1195 = vrot.slane %v1172, 4
      %v1196 = vrot.slane %v1175, 5
      %v1197 = vor.u32 %v1195, %v1196
      %v1198 = vrot.slane %v1197, 4
      %v1199 = vrot.slane %v1183, 5
      %v1200 = vsel %vm318, %v1198, %v1199
      %v1201 = vrot.slane %v1180, 4
      %v1202 = vor.u32 %v1201, %v1199
      %v1203 = vrot.slane %v1202, 4
      %1206 = vst [vmem:[#allocation2 + $0x8] sm:$0xf] %v1200
      %v1207 = vld [vmem:[#allocation2 + $0x14] sm:$0xf]
      %v1208 = vsel %vm331, %v1203, %v1207
      %1209 = vst [vmem:[#allocation2 + $0x14] sm:$0xf] %v1208
      %v1211 = vshrl.u32 %v1157, 16
      %v1213 = vrot.slane %v1211, 7
      %v1214 = vshll.u32 %v1157, 16
      %v1216 = vor.u32 %v1213, %v1214
      %v1217 = vrot.slane %v1213, 4
      %v1219 = vshrl.u32 %v1158, 16
      %v1221 = vrot.slane %v1219, 7
      %v1222 = vshll.u32 %v1158, 16
      %v1224 = vor.u32 %v1221, %v1222
      %v1225 = vsel %vm288, %v1217, %v1224
      %v1228 = vld [vmem:[#allocation2 + $0x18] sm:$0xf]
      %v1229 = vsel %vm309, %v1216, %v1228
      %1230 = vst [vmem:[#allocation2 + $0x18] sm:$0xf] %v1229
      %1231 = vst [vmem:[#allocation2 + $0x24] sm:$0xf] %v1225
      %1232 = vst [vmem:[#allocation2 + $0x1c] sm:$0xf] %v1157
      %1233 = vst [vmem:[#allocation2 + $0x28] sm:$0xf] %v1158
      %v1234 = vrot.slane %v1211, 4
      %v1235 = vrot.slane %v1214, 5
      %v1236 = vor.u32 %v1234, %v1235
      %v1237 = vrot.slane %v1236, 4
      %v1238 = vrot.slane %v1222, 5
      %v1239 = vsel %vm318, %v1237, %v1238
      %v1240 = vrot.slane %v1219, 4
      %v1241 = vor.u32 %v1240, %v1238
      %v1242 = vrot.slane %v1241, 4
      %1245 = vst [vmem:[#allocation2 + $0x20] sm:$0xf] %v1239
      %v1246 = vld [vmem:[#allocation2 + $0x2c] sm:$0xf]
      %v1247 = vsel %vm331, %v1242, %v1246
      %1248 = vst [vmem:[#allocation2 + $0x2c] sm:$0xf] %v1247
      %v1250 = vshrl.u32 %v1159, 16
      %v1252 = vrot.slane %v1250, 7
      %v1253 = vshll.u32 %v1159, 16
      %v1255 = vor.u32 %v1252, %v1253
      %v1256 = vrot.slane %v1252, 4
      %v1258 = vshrl.u32 %v1160, 16
      %v1260 = vrot.slane %v1258, 7
      %v1261 = vshll.u32 %v1160, 16
      %v1263 = vor.u32 %v1260, %v1261
      %v1264 = vsel %vm288, %v1256, %v1263
      %v1267 = vld [vmem:[#allocation2 + $0x30] sm:$0xf]
      %v1268 = vsel %vm309, %v1255, %v1267
      %1269 = vst [vmem:[#allocation2 + $0x30] sm:$0xf] %v1268
      %1270 = vst [vmem:[#allocation2 + $0x3c] sm:$0xf] %v1264
      %1271 = vst [vmem:[#allocation2 + $0x34] sm:$0xf] %v1159
      %1272 = vst [vmem:[#allocation2 + $0x40] sm:$0xf] %v1160
      %v1273 = vrot.slane %v1250, 4
      %v1274 = vrot.slane %v1253, 5
      %v1275 = vor.u32 %v1273, %v1274
      %v1276 = vrot.slane %v1275, 4
      %v1277 = vrot.slane %v1261, 5
      %v1278 = vsel %vm318, %v1276, %v1277
      %v1279 = vrot.slane %v1258, 4
      %v1280 = vor.u32 %v1279, %v1277
      %v1281 = vrot.slane %v1280, 4
      %1284 = vst [vmem:[#allocation2 + $0x38] sm:$0xf] %v1278
      %v1285 = vld [vmem:[#allocation2 + $0x44] sm:$0xf]
      %v1286 = vsel %vm331, %v1281, %v1285
      %1287 = vst [vmem:[#allocation2 + $0x44] sm:$0xf] %v1286
      %v1289 = vshrl.u32 %v1161, 16
      %v1291 = vrot.slane %v1289, 7
      %v1292 = vshll.u32 %v1161, 16
      %v1294 = vor.u32 %v1291, %v1292
      %v1295 = vrot.slane %v1291, 4
      %v1297 = vshrl.u32 %v1162, 16
      %v1299 = vrot.slane %v1297, 7
      %v1300 = vshll.u32 %v1162, 16
      %v1302 = vor.u32 %v1299, %v1300
      %v1303 = vsel %vm288, %v1295, %v1302
      %v1306 = vld [vmem:[#allocation2 + $0x48] sm:$0xf]
      %v1307 = vsel %vm309, %v1294, %v1306
      %1308 = vst [vmem:[#allocation2 + $0x48] sm:$0xf] %v1307
      %1309 = vst [vmem:[#allocation2 + $0x54] sm:$0xf] %v1303
      %1310 = vst [vmem:[#allocation2 + $0x4c] sm:$0xf] %v1161
      %1311 = vst [vmem:[#allocation2 + $0x58] sm:$0xf] %v1162
      %v1312 = vrot.slane %v1289, 4
      %v1313 = vrot.slane %v1292, 5
      %v1314 = vor.u32 %v1312, %v1313
      %v1315 = vrot.slane %v1314, 4
      %v1316 = vrot.slane %v1300, 5
      %v1317 = vsel %vm318, %v1315, %v1316
      %v1318 = vrot.slane %v1297, 4
      %v1319 = vor.u32 %v1318, %v1316
      %v1320 = vrot.slane %v1319, 4
      %1323 = vst [vmem:[#allocation2 + $0x50] sm:$0xf] %v1317
      %v1324 = vld [vmem:[#allocation2 + $0x5c] sm:$0xf]
      %v1325 = vsel %vm331, %v1320, %v1324
      %1326 = vst [vmem:[#allocation2 + $0x5c] sm:$0xf] %v1325
      %v1328 = vshrl.u32 %v1163, 16
      %v1330 = vrot.slane %v1328, 7
      %v1331 = vshll.u32 %v1163, 16
      %v1333 = vor.u32 %v1330, %v1331
      %v1334 = vrot.slane %v1330, 4
      %v1336 = vshrl.u32 %v1164, 16
      %v1338 = vrot.slane %v1336, 7
      %v1339 = vshll.u32 %v1164, 16
      %v1341 = vor.u32 %v1338, %v1339
      %v1342 = vsel %vm288, %v1334, %v1341
      %v1345 = vld [vmem:[#allocation2 + $0x60] sm:$0xf]
      %v1346 = vsel %vm309, %v1333, %v1345
      %1347 = vst [vmem:[#allocation2 + $0x60] sm:$0xf] %v1346
      %1348 = vst [vmem:[#allocation2 + $0x6c] sm:$0xf] %v1342
      %1349 = vst [vmem:[#allocation2 + $0x64] sm:$0xf] %v1163
      %1350 = vst [vmem:[#allocation2 + $0x70] sm:$0xf] %v1164
      %v1351 = vrot.slane %v1328, 4
      %v1352 = vrot.slane %v1331, 5
      %v1353 = vor.u32 %v1351, %v1352
      %v1354 = vrot.slane %v1353, 4
      %v1355 = vrot.slane %v1339, 5
      %v1356 = vsel %vm318, %v1354, %v1355
      %v1357 = vrot.slane %v1336, 4
      %v1358 = vor.u32 %v1357, %v1355
      %v1359 = vrot.slane %v1358, 4
      %1362 = vst [vmem:[#allocation2 + $0x68] sm:$0xf] %v1356
      %v1363 = vld [vmem:[#allocation2 + $0x74] sm:$0xf]
      %v1364 = vsel %vm331, %v1359, %v1363
      %1365 = vst [vmem:[#allocation2 + $0x74] sm:$0xf] %v1364
      %v1367 = vshrl.u32 %v1165, 16
      %v1369 = vrot.slane %v1367, 7
      %v1370 = vshll.u32 %v1165, 16
      %v1372 = vor.u32 %v1369, %v1370
      %v1373 = vrot.slane %v1369, 4
      %v1375 = vshrl.u32 %v1166, 16
      %v1377 = vrot.slane %v1375, 7
      %v1378 = vshll.u32 %v1166, 16
      %v1380 = vor.u32 %v1377, %v1378
      %v1381 = vsel %vm288, %v1373, %v1380
      %v1384 = vld [vmem:[#allocation2 + $0x78] sm:$0xf]
      %v1385 = vsel %vm309, %v1372, %v1384
      %1386 = vst [vmem:[#allocation2 + $0x78] sm:$0xf] %v1385
      %1387 = vst [vmem:[#allocation2 + $0x84] sm:$0xf] %v1381
      %1388 = vst [vmem:[#allocation2 + $0x7c] sm:$0xf] %v1165
      %1389 = vst [vmem:[#allocation2 + $0x88] sm:$0xf] %v1166
      %v1390 = vrot.slane %v1367, 4
      %v1391 = vrot.slane %v1370, 5
      %v1392 = vor.u32 %v1390, %v1391
      %v1393 = vrot.slane %v1392, 4
      %v1394 = vrot.slane %v1378, 5
      %v1395 = vsel %vm318, %v1393, %v1394
      %v1396 = vrot.slane %v1375, 4
      %v1397 = vor.u32 %v1396, %v1394
      %v1398 = vrot.slane %v1397, 4
      %1401 = vst [vmem:[#allocation2 + $0x80] sm:$0xf] %v1395
      %v1402 = vld [vmem:[#allocation2 + $0x8c] sm:$0xf]
      %v1403 = vsel %vm331, %v1398, %v1402
      %1404 = vst [vmem:[#allocation2 + $0x8c] sm:$0xf] %v1403
      %v1406 = vshrl.u32 %v1167, 16
      %v1408 = vrot.slane %v1406, 7
      %v1409 = vshll.u32 %v1167, 16
      %v1411 = vor.u32 %v1408, %v1409
      %v1412 = vrot.slane %v1408, 4
      %v1414 = vshrl.u32 %v1168, 16
      %v1416 = vrot.slane %v1414, 7
      %v1417 = vshll.u32 %v1168, 16
      %v1419 = vor.u32 %v1416, %v1417
      %v1420 = vsel %vm288, %v1412, %v1419
      %v1423 = vld [vmem:[#allocation2 + $0x90] sm:$0xf]
      %v1424 = vsel %vm309, %v1411, %v1423
      %1425 = vst [vmem:[#allocation2 + $0x90] sm:$0xf] %v1424
      %1426 = vst [vmem:[#allocation2 + $0x9c] sm:$0xf] %v1420
      %1427 = vst [vmem:[#allocation2 + $0x94] sm:$0xf] %v1167
      %1428 = vst [vmem:[#allocation2 + $0xa0] sm:$0xf] %v1168
      %v1429 = vrot.slane %v1406, 4
      %v1430 = vrot.slane %v1409, 5
      %v1431 = vor.u32 %v1429, %v1430
      %v1432 = vrot.slane %v1431, 4
      %v1433 = vrot.slane %v1417, 5
      %v1434 = vsel %vm318, %v1432, %v1433
      %v1435 = vrot.slane %v1414, 4
      %v1436 = vor.u32 %v1435, %v1433
      %v1437 = vrot.slane %v1436, 4
      %1440 = vst [vmem:[#allocation2 + $0x98] sm:$0xf] %v1434
      %v1441 = vld [vmem:[#allocation2 + $0xa4] sm:$0xf]
      %v1442 = vsel %vm331, %v1437, %v1441
      %1443 = vst [vmem:[#allocation2 + $0xa4] sm:$0xf] %v1442
      %v1445 = vshrl.u32 %v1169, 16
      %v1447 = vrot.slane %v1445, 7
      %v1448 = vshll.u32 %v1169, 16
      %v1450 = vor.u32 %v1447, %v1448
      %v1451 = vrot.slane %v1447, 4
      %v1453 = vshrl.u32 %v1170, 16
      %v1455 = vrot.slane %v1453, 7
      %v1456 = vshll.u32 %v1170, 16
      %v1458 = vor.u32 %v1455, %v1456
      %v1459 = vsel %vm288, %v1451, %v1458
      %v1462 = vld [vmem:[#allocation2 + $0xa8] sm:$0xf]
      %v1463 = vsel %vm309, %v1450, %v1462
      %1464 = vst [vmem:[#allocation2 + $0xa8] sm:$0xf] %v1463
      %1465 = vst [vmem:[#allocation2 + $0xb4] sm:$0xf] %v1459
      %1466 = vst [vmem:[#allocation2 + $0xac] sm:$0xf] %v1169
      %1467 = vst [vmem:[#allocation2 + $0xb8] sm:$0xf] %v1170
      %v1468 = vrot.slane %v1445, 4
      %v1469 = vrot.slane %v1448, 5
      %v1470 = vor.u32 %v1468, %v1469
      %v1471 = vrot.slane %v1470, 4
      %v1472 = vrot.slane %v1456, 5
      %v1473 = vsel %vm318, %v1471, %v1472
      %v1474 = vrot.slane %v1453, 4
      %v1475 = vor.u32 %v1474, %v1472
      %v1476 = vrot.slane %v1475, 4
      %1479 = vst [vmem:[#allocation2 + $0xb0] sm:$0xf] %v1473
      %v1480 = vld [vmem:[#allocation2 + $0xbc] sm:$0xf]
      %v1481 = vsel %vm331, %v1476, %v1480
      %1482 = vst [vmem:[#allocation2 + $0xbc] sm:$0xf] %v1481
      %v1483 = vld [vmem:[#allocation2] sm:$0xff]
      %v1484 = vld [vmem:[#allocation2 + $0x8] sm:$0xf]
      %v1485 = vld [vmem:[#allocation2 + $0xc] sm:$0xff]
      %v1486 = vld [vmem:[#allocation2 + $0x14] sm:$0xf]
      %v1487 = vld [vmem:[#allocation2 + $0x18] sm:$0xff]
      %v1488 = vld [vmem:[#allocation2 + $0x20] sm:$0xf]
      %v1489 = vld [vmem:[#allocation2 + $0x24] sm:$0xff]
      %v1490 = vld [vmem:[#allocation2 + $0x2c] sm:$0xf]
      %v1491 = vld [vmem:[#allocation2 + $0x30] sm:$0xff]
      %v1492 = vld [vmem:[#allocation2 + $0x38] sm:$0xf]
      %v1493 = vld [vmem:[#allocation2 + $0x3c] sm:$0xff]
      %v1494 = vld [vmem:[#allocation2 + $0x44] sm:$0xf]
      %v1495 = vld [vmem:[#allocation2 + $0x48] sm:$0xff]
      %v1496 = vld [vmem:[#allocation2 + $0x50] sm:$0xf]
      %v1497 = vld [vmem:[#allocation2 + $0x54] sm:$0xff]
      %v1498 = vld [vmem:[#allocation2 + $0x5c] sm:$0xf]
      %v1499 = vld [vmem:[#allocation2 + $0x60] sm:$0xff]
      %v1500 = vld [vmem:[#allocation2 + $0x68] sm:$0xf]
      %v1501 = vld [vmem:[#allocation2 + $0x6c] sm:$0xff]
      %v1502 = vld [vmem:[#allocation2 + $0x74] sm:$0xf]
      %v1503 = vld [vmem:[#allocation2 + $0x78] sm:$0xff]
      %v1504 = vld [vmem:[#allocation2 + $0x80] sm:$0xf]
      %v1505 = vld [vmem:[#allocation2 + $0x84] sm:$0xff]
      %v1506 = vld [vmem:[#allocation2 + $0x8c] sm:$0xf]
      %v1507 = vld [vmem:[#allocation2 + $0x90] sm:$0xff]
      %v1508 = vld [vmem:[#allocation2 + $0x98] sm:$0xf]
      %v1509 = vld [vmem:[#allocation2 + $0x9c] sm:$0xff]
      %v1510 = vld [vmem:[#allocation2 + $0xa4] sm:$0xf]
      %v1511 = vld [vmem:[#allocation2 + $0xa8] sm:$0xff]
      %v1512 = vld [vmem:[#allocation2 + $0xb0] sm:$0xf]
      %v1513 = vld [vmem:[#allocation2 + $0xb4] sm:$0xff]
      %v1514 = vld [vmem:[#allocation2 + $0xbc] sm:$0xf]
      %v1515 = vld [vmem:[%s3] sm:$0xf]
      %v1516 = vld [vmem:[%s3 + $0x4] sm:$0xf]
      %v1517 = vld [vmem:[%s3 + $0x8] sm:$0xf]
      %v1518 = vld [vmem:[%s3 + $0xc] sm:$0xf]
      %v1519 = vld [vmem:[%s3 + $0x10] sm:$0xf]
      %v1520 = vld [vmem:[%s3 + $0x14] sm:$0xf]
      %v1521 = vld [vmem:[%s3 + $0x18] sm:$0xf]
      %v1522 = vld [vmem:[%s3 + $0x1c] sm:$0xf]
      %v1523 = vld [vmem:[%s3 + $0x20] sm:$0xf]
      %v1524 = vld [vmem:[%s3 + $0x24] sm:$0xf]
      %v1525 = vld [vmem:[%s3 + $0x28] sm:$0xf]
      %v1526 = vld [vmem:[%s3 + $0x2c] sm:$0xf]
      %v1527 = vld [vmem:[%s3 + $0x30] sm:$0xf]
      %v1528 = vld [vmem:[%s3 + $0x34] sm:$0xf]
      %v1529 = vld [vmem:[%s3 + $0x38] sm:$0xf]
      %v1530 = vld [vmem:[%s3 + $0x3c] sm:$0xf]
      %v1531 = vld [vmem:[%s3 + $0x40] sm:$0xf]
      %v1532 = vld [vmem:[%s3 + $0x44] sm:$0xf]
      %v1533 = vld [vmem:[%s3 + $0x48] sm:$0xf]
      %v1534 = vld [vmem:[%s3 + $0x4c] sm:$0xf]
      %v1535 = vld [vmem:[%s3 + $0x50] sm:$0xf]
      %v1536 = vld [vmem:[%s3 + $0x54] sm:$0xf]
      %v1537 = vld [vmem:[%s3 + $0x58] sm:$0xf]
      %v1538 = vld [vmem:[%s3 + $0x5c] sm:$0xf]
      %v1539 = vld [vmem:[%s3 + $0x60] sm:$0xf]
      %v1540 = vld [vmem:[%s3 + $0x64] sm:$0xf]
      %v1541 = vld [vmem:[%s3 + $0x68] sm:$0xf]
      %v1542 = vld [vmem:[%s3 + $0x6c] sm:$0xf]
      %v1543 = vld [vmem:[%s3 + $0x70] sm:$0xf]
      %v1544 = vld [vmem:[%s3 + $0x74] sm:$0xf]
      %v1545 = vld [vmem:[%s3 + $0x78] sm:$0xf]
      %v1546 = vld [vmem:[%s3 + $0x7c] sm:$0xf]
      %v1547 = vld [vmem:[%s3 + $0x80] sm:$0xf]
      %v1548 = vld [vmem:[%s3 + $0x84] sm:$0xf]
      %v1549 = vld [vmem:[%s3 + $0x88] sm:$0xf]
      %v1550 = vld [vmem:[%s3 + $0x8c] sm:$0xf]
      %v1551 = vld [vmem:[%s3 + $0x90] sm:$0xf]
      %v1552 = vld [vmem:[%s3 + $0x94] sm:$0xf]
      %v1553 = vld [vmem:[%s3 + $0x98] sm:$0xf]
      %v1554 = vld [vmem:[%s3 + $0x9c] sm:$0xf]
      %v1555 = vld [vmem:[%s3 + $0xa0] sm:$0xf]
      %v1556 = vld [vmem:[%s3 + $0xa4] sm:$0xf]
      %v1557 = vld [vmem:[%s3 + $0xa8] sm:$0xf]
      %v1558 = vld [vmem:[%s3 + $0xac] sm:$0xf]
      %v1559 = vld [vmem:[%s3 + $0xb0] sm:$0xf]
      %v1560 = vld [vmem:[%s3 + $0xb4] sm:$0xf]
      %v1561 = vld [vmem:[%s3 + $0xb8] sm:$0xf]
      %v1562 = vld [vmem:[%s3 + $0xbc] sm:$0xf]
      %v1563 = vld [vmem:[%s4] sm:$0x1]
      %v1565 = vperm.slane %v1563, 0
      %v1599 = vunpack.c.l.b16 %v1483
      %v1600 = vunpack.c.h.b16 %v1483
      %v1601 = vunpack.c.l.b16 %v1484
      %v1602 = vunpack.c.l.b16 %v1485
      %v1603 = vunpack.c.h.b16 %v1485
      %v1604 = vunpack.c.l.b16 %v1486
      %v1605 = vunpack.c.l.b16 %v1487
      %v1606 = vunpack.c.h.b16 %v1487
      %v1607 = vunpack.c.l.b16 %v1488
      %v1608 = vunpack.c.l.b16 %v1489
      %v1609 = vunpack.c.h.b16 %v1489
      %v1610 = vunpack.c.l.b16 %v1490
      %v1611 = vunpack.c.l.b16 %v1491
      %v1612 = vunpack.c.h.b16 %v1491
      %v1613 = vunpack.c.l.b16 %v1492
      %v1614 = vunpack.c.l.b16 %v1493
      %v1615 = vunpack.c.h.b16 %v1493
      %v1616 = vunpack.c.l.b16 %v1494
      %v1617 = vunpack.c.l.b16 %v1495
      %v1618 = vunpack.c.h.b16 %v1495
      %v1619 = vunpack.c.l.b16 %v1496
      %v1620 = vunpack.c.l.b16 %v1497
      %v1621 = vunpack.c.h.b16 %v1497
      %v1622 = vunpack.c.l.b16 %v1498
      %v1623 = vunpack.c.l.b16 %v1499
      %v1624 = vunpack.c.h.b16 %v1499
      %v1625 = vunpack.c.l.b16 %v1500
      %v1626 = vunpack.c.l.b16 %v1501
      %v1627 = vunpack.c.h.b16 %v1501
      %v1628 = vunpack.c.l.b16 %v1502
      %v1629 = vunpack.c.l.b16 %v1503
      %v1630 = vunpack.c.h.b16 %v1503
      %v1631 = vunpack.c.l.b16 %v1504
      %v1632 = vunpack.c.l.b16 %v1505
      %v1633 = vunpack.c.h.b16 %v1505
      %v1634 = vunpack.c.l.b16 %v1506
      %v1635 = vunpack.c.l.b16 %v1507
      %v1636 = vunpack.c.h.b16 %v1507
      %v1637 = vunpack.c.l.b16 %v1508
      %v1638 = vunpack.c.l.b16 %v1509
      %v1639 = vunpack.c.h.b16 %v1509
      %v1640 = vunpack.c.l.b16 %v1510
      %v1641 = vunpack.c.l.b16 %v1511
      %v1642 = vunpack.c.h.b16 %v1511
      %v1643 = vunpack.c.l.b16 %v1512
      %v1644 = vunpack.c.l.b16 %v1513
      %v1645 = vunpack.c.h.b16 %v1513
      %v1646 = vunpack.c.l.b16 %v1514
      %v1647 = vpack.c.b16 %v1602, %v1599
      %v1648 = vpack.c.b16 %v1603, %v1600
      %v1649 = vpack.c.b16 %v1604, %v1601
      %v1650 = vpack.c.b16 %v1608, %v1605
      %v1651 = vpack.c.b16 %v1609, %v1606
      %v1652 = vpack.c.b16 %v1610, %v1607
      %v1653 = vpack.c.b16 %v1614, %v1611
      %v1654 = vpack.c.b16 %v1615, %v1612
      %v1655 = vpack.c.b16 %v1616, %v1613
      %v1656 = vpack.c.b16 %v1620, %v1617
      %v1657 = vpack.c.b16 %v1621, %v1618
      %v1658 = vpack.c.b16 %v1622, %v1619
      %v1659 = vpack.c.b16 %v1626, %v1623
      %v1660 = vpack.c.b16 %v1627, %v1624
      %v1661 = vpack.c.b16 %v1628, %v1625
      %v1662 = vpack.c.b16 %v1632, %v1629
      %v1663 = vpack.c.b16 %v1633, %v1630
      %v1664 = vpack.c.b16 %v1634, %v1631
      %v1665 = vpack.c.b16 %v1638, %v1635
      %v1666 = vpack.c.b16 %v1639, %v1636
      %v1667 = vpack.c.b16 %v1640, %v1637
      %v1668 = vpack.c.b16 %v1644, %v1641
      %v1669 = vpack.c.b16 %v1645, %v1642
      %v1670 = vpack.c.b16 %v1646, %v1643
      %v1743 = vunpack.c.l.b16 %v1515
      %v1744 = vunpack.c.l.b16 %v1516
      %v1745 = vunpack.c.l.b16 %v1517
      %v1746 = vunpack.c.l.b16 %v1518
      %v1747 = vunpack.c.l.b16 %v1519
      %v1748 = vunpack.c.l.b16 %v1520
      %v1749 = vunpack.c.l.b16 %v1521
      %v1750 = vunpack.c.l.b16 %v1522
      %v1751 = vunpack.c.l.b16 %v1523
      %v1752 = vunpack.c.l.b16 %v1524
      %v1753 = vunpack.c.l.b16 %v1525
      %v1754 = vunpack.c.l.b16 %v1526
      %v1755 = vunpack.c.l.b16 %v1527
      %v1756 = vunpack.c.l.b16 %v1528
      %v1757 = vunpack.c.l.b16 %v1529
      %v1758 = vunpack.c.l.b16 %v1530
      %v1759 = vunpack.c.l.b16 %v1531
      %v1760 = vunpack.c.l.b16 %v1532
      %v1761 = vunpack.c.l.b16 %v1533
      %v1762 = vunpack.c.l.b16 %v1534
      %v1763 = vunpack.c.l.b16 %v1535
      %v1764 = vunpack.c.l.b16 %v1536
      %v1765 = vunpack.c.l.b16 %v1537
      %v1766 = vunpack.c.l.b16 %v1538
      %v1767 = vunpack.c.l.b16 %v1539
      %v1768 = vunpack.c.l.b16 %v1540
      %v1769 = vunpack.c.l.b16 %v1541
      %v1770 = vunpack.c.l.b16 %v1542
      %v1771 = vunpack.c.l.b16 %v1543
      %v1772 = vunpack.c.l.b16 %v1544
      %v1773 = vunpack.c.l.b16 %v1545
      %v1774 = vunpack.c.l.b16 %v1546
      %v1775 = vunpack.c.l.b16 %v1547
      %v1776 = vunpack.c.l.b16 %v1548
      %v1777 = vunpack.c.l.b16 %v1549
      %v1778 = vunpack.c.l.b16 %v1550
      %v1779 = vunpack.c.l.b16 %v1551
      %v1780 = vunpack.c.l.b16 %v1552
      %v1781 = vunpack.c.l.b16 %v1553
      %v1782 = vunpack.c.l.b16 %v1554
      %v1783 = vunpack.c.l.b16 %v1555
      %v1784 = vunpack.c.l.b16 %v1556
      %v1785 = vunpack.c.l.b16 %v1557
      %v1786 = vunpack.c.l.b16 %v1558
      %v1787 = vunpack.c.l.b16 %v1559
      %v1788 = vunpack.c.l.b16 %v1560
      %v1789 = vunpack.c.l.b16 %v1561
      %v1790 = vunpack.c.l.b16 %v1562
      %v1791 = vpack.c.b16 %v1744, %v1743
      %v1792 = vpack.c.b16 %v1746, %v1745
      %v1793 = vpack.c.b16 %v1748, %v1747
      %v1794 = vpack.c.b16 %v1750, %v1749
      %v1795 = vpack.c.b16 %v1752, %v1751
      %v1796 = vpack.c.b16 %v1754, %v1753
      %v1797 = vpack.c.b16 %v1756, %v1755
      %v1798 = vpack.c.b16 %v1758, %v1757
      %v1799 = vpack.c.b16 %v1760, %v1759
      %v1800 = vpack.c.b16 %v1762, %v1761
      %v1801 = vpack.c.b16 %v1764, %v1763
      %v1802 = vpack.c.b16 %v1766, %v1765
      %v1803 = vpack.c.b16 %v1768, %v1767
      %v1804 = vpack.c.b16 %v1770, %v1769
      %v1805 = vpack.c.b16 %v1772, %v1771
      %v1806 = vpack.c.b16 %v1774, %v1773
      %v1807 = vpack.c.b16 %v1776, %v1775
      %v1808 = vpack.c.b16 %v1778, %v1777
      %v1809 = vpack.c.b16 %v1780, %v1779
      %v1810 = vpack.c.b16 %v1782, %v1781
      %v1811 = vpack.c.b16 %v1784, %v1783
      %v1812 = vpack.c.b16 %v1786, %v1785
      %v1813 = vpack.c.b16 %v1788, %v1787
      %v1814 = vpack.c.b16 %v1790, %v1789
      %1839 = vmatpush.bf16.msra.mxu0 %v1798
      %1840 = vmatpush.bf16.msra.mxu0 %v1797
      %1841 = vmatpush.bf16.msra.mxu0 %v1796
      %1842 = vmatpush.bf16.msra.mxu0 %v1795
      %1843 = vmatpush.bf16.msra.mxu0 %v1794
      %1844 = vmatpush.bf16.msra.mxu0 %v1793
      %1845 = vmatpush.bf16.msra.mxu0 %v1792
      %1846 = vmatpush.bf16.msra.mxu0 %v1791
      %1847 = vmatmul.bf16.gmra.mxu0 %v1647
      %v1848 = vpop.f32.mrf.mxu0
      %v1849 = vadd.f32 %v1565, %v1848
      %v1850 = vpop.f32.mrf.mxu0
      %v1851 = vadd.f32 %v1565, %v1850
      %1852 = vmatmul.bf16.gmra.mxu0 %v1650
      %v1853 = vpop.f32.mrf.mxu0
      %v1854 = vadd.f32 %v1565, %v1853
      %v1855 = vpop.f32.mrf.mxu0
      %v1856 = vadd.f32 %v1565, %v1855
      %1857 = vmatmul.bf16.gmra.mxu0 %v1653
      %v1858 = vpop.f32.mrf.mxu0
      %v1859 = vadd.f32 %v1565, %v1858
      %v1860 = vpop.f32.mrf.mxu0
      %v1861 = vadd.f32 %v1565, %v1860
      %1862 = vmatmul.bf16.gmra.mxu0 %v1656
      %v1863 = vpop.f32.mrf.mxu0
      %v1864 = vadd.f32 %v1565, %v1863
      %v1865 = vpop.f32.mrf.mxu0
      %v1866 = vadd.f32 %v1565, %v1865
      %1867 = vmatmul.bf16.gmra.mxu0 %v1659
      %v1868 = vpop.f32.mrf.mxu0
      %v1869 = vadd.f32 %v1565, %v1868
      %v1870 = vpop.f32.mrf.mxu0
      %v1871 = vadd.f32 %v1565, %v1870
      %1872 = vmatmul.bf16.gmra.mxu0 %v1662
      %v1873 = vpop.f32.mrf.mxu0
      %v1874 = vadd.f32 %v1565, %v1873
      %v1875 = vpop.f32.mrf.mxu0
      %v1876 = vadd.f32 %v1565, %v1875
      %1877 = vmatmul.bf16.gmra.mxu0 %v1665
      %v1878 = vpop.f32.mrf.mxu0
      %v1879 = vadd.f32 %v1565, %v1878
      %v1880 = vpop.f32.mrf.mxu0
      %v1881 = vadd.f32 %v1565, %v1880
      %1882 = vmatmul.bf16.gmra.mxu0 %v1668
      %v1883 = vpop.f32.mrf.mxu0
      %v1884 = vadd.f32 %v1565, %v1883
      %v1885 = vpop.f32.mrf.mxu0
      %v1886 = vadd.f32 %v1565, %v1885
      %1887 = vdwg.mxu0
      %1888 = vmatpush.bf16.msra.mxu0 %v1806
      %1889 = vmatpush.bf16.msra.mxu0 %v1805
      %1890 = vmatpush.bf16.msra.mxu0 %v1804
      %1891 = vmatpush.bf16.msra.mxu0 %v1803
      %1892 = vmatpush.bf16.msra.mxu0 %v1802
      %1893 = vmatpush.bf16.msra.mxu0 %v1801
      %1894 = vmatpush.bf16.msra.mxu0 %v1800
      %1895 = vmatpush.bf16.msra.mxu0 %v1799
      %1896 = vmatmul.bf16.gmra.mxu0 %v1648
      %v1897 = vpop.f32.mrf.mxu0
      %v1898 = vadd.f32 %v1849, %v1897
      %v1899 = vpop.f32.mrf.mxu0
      %v1900 = vadd.f32 %v1851, %v1899
      %1901 = vmatmul.bf16.gmra.mxu0 %v1651
      %v1902 = vpop.f32.mrf.mxu0
      %v1903 = vadd.f32 %v1854, %v1902
      %v1904 = vpop.f32.mrf.mxu0
      %v1905 = vadd.f32 %v1856, %v1904
      %1906 = vmatmul.bf16.gmra.mxu0 %v1654
      %v1907 = vpop.f32.mrf.mxu0
      %v1908 = vadd.f32 %v1859, %v1907
      %v1909 = vpop.f32.mrf.mxu0
      %v1910 = vadd.f32 %v1861, %v1909
      %1911 = vmatmul.bf16.gmra.mxu0 %v1657
      %v1912 = vpop.f32.mrf.mxu0
      %v1913 = vadd.f32 %v1864, %v1912
      %v1914 = vpop.f32.mrf.mxu0
      %v1915 = vadd.f32 %v1866, %v1914
      %1916 = vmatmul.bf16.gmra.mxu0 %v1660
      %v1917 = vpop.f32.mrf.mxu0
      %v1918 = vadd.f32 %v1869, %v1917
      %v1919 = vpop.f32.mrf.mxu0
      %v1920 = vadd.f32 %v1871, %v1919
      %1921 = vmatmul.bf16.gmra.mxu0 %v1663
      %v1922 = vpop.f32.mrf.mxu0
      %v1923 = vadd.f32 %v1874, %v1922
      %v1924 = vpop.f32.mrf.mxu0
      %v1925 = vadd.f32 %v1876, %v1924
      %1926 = vmatmul.bf16.gmra.mxu0 %v1666
      %v1927 = vpop.f32.mrf.mxu0
      %v1928 = vadd.f32 %v1879, %v1927
      %v1929 = vpop.f32.mrf.mxu0
      %v1930 = vadd.f32 %v1881, %v1929
      %1931 = vmatmul.bf16.gmra.mxu0 %v1669
      %v1932 = vpop.f32.mrf.mxu0
      %v1933 = vadd.f32 %v1884, %v1932
      %v1934 = vpop.f32.mrf.mxu0
      %v1935 = vadd.f32 %v1886, %v1934
      %1936 = vdwg.mxu0
      %1937 = vmatpush.bf16.msra.mxu0 %v1814
      %1938 = vmatpush.bf16.msra.mxu0 %v1813
      %1939 = vmatpush.bf16.msra.mxu0 %v1812
      %1940 = vmatpush.bf16.msra.mxu0 %v1811
      %1941 = vmatpush.bf16.msra.mxu0 %v1810
      %1942 = vmatpush.bf16.msra.mxu0 %v1809
      %1943 = vmatpush.bf16.msra.mxu0 %v1808
      %1944 = vmatpush.bf16.msra.mxu0 %v1807
      %1945 = vmatmul.bf16.gmra.mxu0 %v1649
      %v1946 = vpop.f32.mrf.mxu0
      %v1947 = vadd.f32 %v1898, %v1946
      %v1948 = vpop.f32.mrf.mxu0
      %v1949 = vadd.f32 %v1900, %v1948
      %1950 = vmatmul.bf16.gmra.mxu0 %v1652
      %v1951 = vpop.f32.mrf.mxu0
      %v1952 = vadd.f32 %v1903, %v1951
      %v1953 = vpop.f32.mrf.mxu0
      %v1954 = vadd.f32 %v1905, %v1953
      %1955 = vmatmul.bf16.gmra.mxu0 %v1655
      %v1956 = vpop.f32.mrf.mxu0
      %v1957 = vadd.f32 %v1908, %v1956
      %v1958 = vpop.f32.mrf.mxu0
      %v1959 = vadd.f32 %v1910, %v1958
      %1960 = vmatmul.bf16.gmra.mxu0 %v1658
      %v1961 = vpop.f32.mrf.mxu0
      %v1962 = vadd.f32 %v1913, %v1961
      %v1963 = vpop.f32.mrf.mxu0
      %v1964 = vadd.f32 %v1915, %v1963
      %1965 = vmatmul.bf16.gmra.mxu0 %v1661
      %v1966 = vpop.f32.mrf.mxu0
      %v1967 = vadd.f32 %v1918, %v1966
      %v1968 = vpop.f32.mrf.mxu0
      %v1969 = vadd.f32 %v1920, %v1968
      %1970 = vmatmul.bf16.gmra.mxu0 %v1664
      %v1971 = vpop.f32.mrf.mxu0
      %v1972 = vadd.f32 %v1923, %v1971
      %v1973 = vpop.f32.mrf.mxu0
      %v1974 = vadd.f32 %v1925, %v1973
      %1975 = vmatmul.bf16.gmra.mxu0 %v1667
      %v1976 = vpop.f32.mrf.mxu0
      %v1977 = vadd.f32 %v1928, %v1976
      %v1978 = vpop.f32.mrf.mxu0
      %v1979 = vadd.f32 %v1930, %v1978
      %1980 = vmatmul.bf16.gmra.mxu0 %v1670
      %v1981 = vpop.f32.mrf.mxu0
      %v1982 = vadd.f32 %v1933, %v1981
      %v1983 = vpop.f32.mrf.mxu0
      %v1984 = vadd.f32 %v1935, %v1983
      %1985 = vdwg.mxu0
      %v1986 = vld [vmem:[%s220] sm:$0xff]
      %v1987 = vld [vmem:[%s220 + $0x8] sm:$0xff]
      %v1988 = vld [vmem:[%s220 + $0x10] sm:$0xff]
      %v1989 = vld [vmem:[%s220 + $0x18] sm:$0xff]
      %v1990 = vld [vmem:[%s220 + $0x20] sm:$0xff]
      %v1991 = vld [vmem:[%s220 + $0x28] sm:$0xff]
      %v1992 = vld [vmem:[%s220 + $0x30] sm:$0xff]
      %v1993 = vld [vmem:[%s220 + $0x38] sm:$0xff]
      %v1994 = vld [vmem:[%s220 + $0x40] sm:$0xff]
      %v1995 = vld [vmem:[%s220 + $0x48] sm:$0xff]
      %v1996 = vld [vmem:[%s220 + $0x50] sm:$0xff]
      %v1997 = vld [vmem:[%s220 + $0x58] sm:$0xff]
      %v1998 = vld [vmem:[%s220 + $0x60] sm:$0xff]
      %v1999 = vld [vmem:[%s220 + $0x68] sm:$0xff]
      %v2000 = vld [vmem:[%s220 + $0x70] sm:$0xff]
      %v2001 = vld [vmem:[%s220 + $0x78] sm:$0xff]
      %v2002 = vadd.f32 %v1947, %v1986
      %v2003 = vadd.f32 %v1949, %v1987
      %v2004 = vadd.f32 %v1952, %v1988
      %v2005 = vadd.f32 %v1954, %v1989
      %v2006 = vadd.f32 %v1957, %v1990
      %v2007 = vadd.f32 %v1959, %v1991
      %v2008 = vadd.f32 %v1962, %v1992
      %v2009 = vadd.f32 %v1964, %v1993
      %v2010 = vadd.f32 %v1967, %v1994
      %v2011 = vadd.f32 %v1969, %v1995
      %v2012 = vadd.f32 %v1972, %v1996
      %v2013 = vadd.f32 %v1974, %v1997
      %v2014 = vadd.f32 %v1977, %v1998
      %v2015 = vadd.f32 %v1979, %v1999
      %v2016 = vadd.f32 %v1982, %v2000
      %v2017 = vadd.f32 %v1984, %v2001
      %v2018 = vmax.f32 %v2002, 0.0
      %v2019 = vmax.f32 %v2003, 0.0
      %v2020 = vmax.f32 %v2004, 0.0
      %v2021 = vmax.f32 %v2005, 0.0
      %v2022 = vmax.f32 %v2006, 0.0
      %v2023 = vmax.f32 %v2007, 0.0
      %v2024 = vmax.f32 %v2008, 0.0
      %v2025 = vmax.f32 %v2009, 0.0
      %v2026 = vmax.f32 %v2010, 0.0
      %v2027 = vmax.f32 %v2011, 0.0
      %v2028 = vmax.f32 %v2012, 0.0
      %v2029 = vmax.f32 %v2013, 0.0
      %v2030 = vmax.f32 %v2014, 0.0
      %v2031 = vmax.f32 %v2015, 0.0
      %v2032 = vmax.f32 %v2016, 0.0
      %v2033 = vmax.f32 %v2017, 0.0
      %2034 = vst [vmem:[%s226] sm:$0xff] %v2018
      %2035 = vst [vmem:[%s226 + $0x8] sm:$0xff] %v2019
      %2036 = vst [vmem:[%s226 + $0x10] sm:$0xff] %v2020
      %2037 = vst [vmem:[%s226 + $0x18] sm:$0xff] %v2021
      %2038 = vst [vmem:[%s226 + $0x20] sm:$0xff] %v2022
      %2039 = vst [vmem:[%s226 + $0x28] sm:$0xff] %v2023
      %2040 = vst [vmem:[%s226 + $0x30] sm:$0xff] %v2024
      %2041 = vst [vmem:[%s226 + $0x38] sm:$0xff] %v2025
      %2042 = vst [vmem:[%s226 + $0x40] sm:$0xff] %v2026
      %2043 = vst [vmem:[%s226 + $0x48] sm:$0xff] %v2027
      %2044 = vst [vmem:[%s226 + $0x50] sm:$0xff] %v2028
      %2045 = vst [vmem:[%s226 + $0x58] sm:$0xff] %v2029
      %2046 = vst [vmem:[%s226 + $0x60] sm:$0xff] %v2030
      %2047 = vst [vmem:[%s226 + $0x68] sm:$0xff] %v2031
      %2048 = vst [vmem:[%s226 + $0x70] sm:$0xff] %v2032
      %2049 = vst [vmem:[%s226 + $0x78] sm:$0xff] %v2033
      %s2050 = smul.u32 16, %s16
      %p2051 = scmp.lt.s32.totalorder %s2050, 31
      %s2052 = scalar_select %p2051, %s2050, 31
      %s2053 = smul.addr %s2052, 8
      %s2054 = scalar_lea.vmem %s5, %s2053
      // Predicated region
      $region41: #{forward.1} parent=39 // pred_check
        %p2055 = pneg %p144
      $region42: #{forward.1} parent=39 // pred_check_branch
        %2057 = sbr.rel (%p2055) target = $region44
      $region43: #{forward.1} parent=39 // pred_region
        %s2058 = smul.u32 16, %s16
      $region44: #{forward.1} parent=39 // pred_fallthru
        _
    $region40: #{forward.1} parent=5 // pred_fallthru
      _
    %p2059 = scmp.le.s32.totalorder 2, %s11
    // Predicated region
    $region45: #{forward.1} parent=5 // pred_check
      %p2060 = pneg %p2059
    $region46: #{forward.1} parent=5 // pred_check_branch
      %2062 = sbr.rel (%p2060) target = $region48
    $region47: #{forward.1} parent=5 // pred_region
      %s2063 = ssub.s32 %s11, 2
      // Predicated region
      $region49: #{forward.1} parent=47 // pred_check
        %p2064 = pneg %p150
      $region50: #{forward.1} parent=47 // pred_check_branch
        %2066 = sbr.rel (%p2064) target = $region52
      $region51: #{forward.1} parent=47 // pred_region
        %s2067 = smul.u32 16, %s17
        %p2068 = scmp.lt.s32.totalorder %s2067, 31
        %s2069 = scalar_select %p2068, %s2067, 31
        %s2070 = smul.addr %s2069, 8
        %s2071 = scalar_lea.vmem %s5, %s2070
      $region52: #{forward.1} parent=47 // pred_fallthru
        _
    $region48: #{forward.1} parent=5 // pred_fallthru
      _
  $region6: #{forward.1} parent=0 // loop_footer
    %s15 = sadd.s32 1, %s11
  $region7: #{forward.1} parent=0 // loop_footer_branch
    %10 = sbr.rel target = $region3
  $region8: #{forward.1} parent=0 // loop_exit
    _

</llo_original>
